<compile_context>
chip_gen: v7x
topology: tpu7x:2x2x1
jax: 0.10.0
libtpu: 0.0.40
codegen_flags: <defaults>
</compile_context>

<pallas_src>
import jax
import jax.numpy as jnp
from jax import lax
from jax.experimental import pallas as pl
from jax.experimental.pallas import tpu as pltpu


def _make_cablock_kernel(C, DW, H, W, eps):
    HW = H * W
    # Column offsets inside the packed parameter slab (rows = DW).
    B1 = C             # conv1 bias
    TAP = C + 1        # 9 depthwise taps
    B2 = C + 10        # conv2 bias
    W3 = C + 11        # conv3 weight (C, DW), stored in rows [0:C]
    GC = C + 11 + DW   # LayerNorm gamma (rows [0:C])
    BC = GC + 1        # LayerNorm beta
    B3 = GC + 2        # conv3 bias

    def kernel(x_ref, p_ref, m_ref, o_ref):
        # ---- hoist tiny parameters / masks once (reused across the unrolled batch loop) ----
        P = p_ref[...]                        # (DW, PCOLS) packed params, one small DMA
        w1   = P[:, 0:C]                      # (DW, C)
        b1   = P[:, B1:B1 + 1]                # (DW, 1)
        taps = P[:, TAP:TAP + 9]              # (DW, 9)
        b2   = P[:, B2:B2 + 1]                # (DW, 1)
        w3   = P[0:C, W3:W3 + DW]             # (C, DW)
        gam  = P[0:C, GC:GC + 1]              # (C, 1)
        bet  = P[0:C, BC:BC + 1]              # (C, 1)
        b3   = P[0:C, B3:B3 + 1]              # (C, 1)

        M = m_ref[...]                        # (4, HW) separable boundary masks
        cmL, cmR = M[0:1, :], M[1:2, :]       # column masks (dj = -1 / +1)
        rmU, rmD = M[2:3, :], M[3:4, :]       # row masks    (di = -1 / +1)

        Bb = x_ref.shape[0]
        for b in range(Bb):                   # small static batch unroll inside one grid step
            x = x_ref[b]                      # (C, HW) f32, lane-dense

            # --- LayerNorm2d: single-pass statistics  var = E[x^2] - mu^2 ---
            s1 = jnp.mean(x, axis=0, keepdims=True)          # (1, HW)
            s2 = jnp.mean(x * x, axis=0, keepdims=True)      # (1, HW)
            inv = lax.rsqrt(s2 - s1 * s1 + eps)
            y = (x - s1) * inv
            y = y * gam + bet                                # (C, HW)

            # --- conv1: 1x1, C -> DW as an unrolled VPU MAC (K = C tiny; skip MXU) ---
            h = w1[:, 0:1] * y[0:1, :]
            for cc in range(1, C):
                h = h + w1[:, cc:cc + 1] * y[cc:cc + 1, :]
            h = h + b1                                       # (DW, HW)

            # --- conv2: depthwise 3x3, padding=1, via shared masked lane-rolls ---
            gL = jnp.roll(h, 1, axis=1) * cmL        # left  neighbour (dj = -1), column-masked
            gR = jnp.roll(h, HW - 1, axis=1) * cmR   # right neighbour (dj = +1), column-masked
            acc = None
            for di in (-1, 0, 1):
                sv = (-di * W) % HW
                sh = (lambda z, s=sv: jnp.roll(z, s, axis=1) if s else z)
                t0 = (di + 1) * 3
                comb = (taps[:, t0:t0 + 1] * sh(gL)
                        + taps[:, t0 + 1:t0 + 2] * sh(h)
                        + taps[:, t0 + 2:t0 + 3] * sh(gR))
                if di == -1:
                    comb = comb * rmU                # row mask only for the shifted rows
                elif di == 1:
                    comb = comb * rmD
                acc = comb if acc is None else acc + comb

            # --- ReLU (conv2 bias applied before the nonlinearity, as in PyTorch) ---
            h2 = jnp.maximum(acc + b2, 0.0)                  # (DW, HW)

            # --- conv3: 1x1, DW -> C as an unrolled VPU MAC ---
            out = w3[:, 0:1] * h2[0:1, :]
            for d in range(1, DW):
                out = out + w3[:, d:d + 1] * h2[d:d + 1, :]
            out = out + b3                                   # (C, HW)

            # dropout1 is Identity (drop_out_rate == 0.0)
            o_ref[b] = out.astype(o_ref.dtype)

    return kernel


def _num_tensorcores_per_chip():
    # v5e / v6e: 1 TensorCore per chip; v7x: 2. Fall back to 1 on anything unknown.
    try:
        kind = jax.devices()[0].device_kind.lower()
    except Exception:
        return 1
    return 2 if "v7" in kind else 1


def cablock_forward(x, ln_w, ln_b, w1, b1, w2, b2, w3, b3, eps=1e-6,
                    batch_block=None):
    """CABlock forward.

    x:    (B, C, H, W)  NCHW, same as the PyTorch module input.
    ln_w: (C,)  ln_b: (C,)            LayerNorm2d affine parameters.
    w1:   (DW, C, 1, 1)  b1: (DW,)    pointwise conv c -> DW (= 2c)
    w2:   (DW, 1, 3, 3)  b2: (DW,)    depthwise 3x3 conv (groups = DW)
    w3:   (C, DW, 1, 1)  b3: (C,)     pointwise conv DW -> c
    """
    B, C, H, W = x.shape
    DW = w1.shape[0]
    HW = H * W
    f32 = jnp.float32

    # One grid step on single-TC chips; 2 parallel steps (one per TC) on v7x when possible.
    if batch_block is None:
        n_tc = _num_tensorcores_per_chip()
        batch_block = B // n_tc if (n_tc > 1 and B % n_tc == 0) else B
    assert B % batch_block == 0, (B, batch_block)
    n_steps = B // batch_block

    # Channel-major, spatial-flattened view (pure reshape, no transpose / HBM traffic).
    x2 = x.reshape(B, C, HW)

    # --- pack the 8 tiny parameter tensors into ONE slab -> a single parameter DMA ---
    PCOLS = C + 14 + DW
    slab = jnp.zeros((DW, PCOLS), f32)
    slab = slab.at[:, 0:C].set(w1.reshape(DW, C).astype(f32))
    slab = slab.at[:, C].set(b1.astype(f32))
    slab = slab.at[:, C + 1:C + 10].set(w2.reshape(DW, 9).astype(f32))
    slab = slab.at[:, C + 10].set(b2.astype(f32))
    slab = slab.at[0:C, C + 11:C + 11 + DW].set(w3.reshape(C, DW).astype(f32))
    slab = slab.at[0:C, C + 11 + DW].set(ln_w.astype(f32))
    slab = slab.at[0:C, C + 12 + DW].set(ln_b.astype(f32))
    slab = slab.at[0:C, C + 13 + DW].set(b3.astype(f32))

    # --- separable boundary masks: 4 * HW values instead of the dense 9 * HW array ---
    jj = jnp.arange(HW) % W
    ii = jnp.arange(HW) // W
    masks = jnp.stack(
        [(jj >= 1), (jj <= W - 2), (ii >= 1), (ii <= H - 2)], axis=0
    ).astype(f32)                                            # (4, HW)

    const = lambda i: (0, 0)   # grid-invariant parameter / mask blocks

    out2 = pl.pallas_call(
        _make_cablock_kernel(C, DW, H, W, eps),
        out_shape=jax.ShapeDtypeStruct((B, C, HW), x.dtype),
        grid_spec=pltpu.PrefetchScalarGridSpec(
            num_scalar_prefetch=0,
            grid=(n_steps,),
            in_specs=[
                pl.BlockSpec((batch_block, C, HW), lambda i: (i, 0, 0)),  # x
                pl.BlockSpec((DW, PCOLS), const),                         # packed params
                pl.BlockSpec((4, HW), const),                             # boundary masks
            ],
            out_specs=pl.BlockSpec((batch_block, C, HW), lambda i: (i, 0, 0)),
        ),
        compiler_params=pltpu.CompilerParams(
            dimension_semantics=("parallel",),
        ),
    )(x2, slab, masks)

    return out2.reshape(B, C, H, W)


def _reference_forward(x, ln_w, ln_b, w1, b1, w2, b2, w3, b3, eps=1e-6):
    """Pure-JAX reference mirroring the PyTorch CABlock forward."""
    B, C, H, W = x.shape
    DW = w1.shape[0]
    mu = jnp.mean(x, axis=1, keepdims=True)
    var = jnp.mean((x - mu) ** 2, axis=1, keepdims=True)
    y = (x - mu) / jnp.sqrt(var + eps)
    y = y * ln_w[None, :, None, None] + ln_b[None, :, None, None]
    h = jnp.einsum("oc,bchw->bohw", w1.reshape(DW, C), y,
                   precision=lax.Precision.HIGHEST) + b1[None, :, None, None]
    h = lax.conv_general_dilated(
        h, w2, window_strides=(1, 1), padding=((1, 1), (1, 1)),
        dimension_numbers=("NCHW", "OIHW", "NCHW"),
        feature_group_count=DW,
        precision=lax.Precision.HIGHEST) + b2[None, :, None, None]
    h = jnp.maximum(h, 0.0)
    out = jnp.einsum("od,bdhw->bohw", w3.reshape(C, DW), h,
                     precision=lax.Precision.HIGHEST) + b3[None, :, None, None]
    return out


if __name__ == "__main__":
    key = jax.random.PRNGKey(0)
    keys = jax.random.split(key, 9)

    B, C, H, W = 2, 4, 16, 16
    DW = 2 * C   # DW_Expand = 2

    x = jax.random.normal(keys[0], (B, C, H, W), dtype=jnp.float32)
    ln_w = 1.0 + 0.1 * jax.random.normal(keys[1], (C,), dtype=jnp.float32)
    ln_b = 0.1 * jax.random.normal(keys[2], (C,), dtype=jnp.float32)
    w1 = 0.1 * jax.random.normal(keys[3], (DW, C, 1, 1), dtype=jnp.float32)
    b1 = 0.1 * jax.random.normal(keys[4], (DW,), dtype=jnp.float32)
    w2 = 0.1 * jax.random.normal(keys[5], (DW, 1, 3, 3), dtype=jnp.float32)
    b2 = 0.1 * jax.random.normal(keys[6], (DW,), dtype=jnp.float32)
    w3 = 0.1 * jax.random.normal(keys[7], (C, DW, 1, 1), dtype=jnp.float32)
    b3 = 0.1 * jax.random.normal(keys[8], (C,), dtype=jnp.float32)

    out = cablock_forward(x, ln_w, ln_b, w1, b1, w2, b2, w3, b3)
    out = jax.block_until_ready(out)

    ref = _reference_forward(x, ln_w, ln_b, w1, b1, w2, b2, w3, b3)
    assert out.shape == (B, C, H, W), out.shape
    max_err = float(jnp.max(jnp.abs(out - ref)))
    assert jnp.allclose(out, ref, atol=2e-4, rtol=2e-4), f"mismatch vs reference: {max_err}"

    print("KERNEL_OK")
</pallas_src>

<mosaic_0001>
module attributes {stable_mosaic.version = 11 : i64} {
  func.func @kernel(%arg0: i32, %arg1: memref<2x4x256xf32, #tpu.memory_space<vmem>>, %arg2: memref<8x26xf32, #tpu.memory_space<vmem>>, %arg3: memref<4x256xf32, #tpu.memory_space<vmem>>, %arg4: memref<2x4x256xf32, #tpu.memory_space<vmem>>) attributes {dimension_semantics = [#tpu.dimension_semantics<parallel>], iteration_bounds = array<i64: 1>, scalar_prefetch = 0 : i64, scratch_operands = 0 : i64, tpu.core_type = #tpu.core_type<tc>, window_params = [{transform_indices = @transform_0, window_bounds = array<i64: 2, 4, 256>}, {pipeline_mode = #tpu.pipeline_mode<synchronous>, transform_indices = @transform_1, window_bounds = array<i64: 8, 26>}, {pipeline_mode = #tpu.pipeline_mode<synchronous>, transform_indices = @transform_2, window_bounds = array<i64: 4, 256>}, {transform_indices = @transform_3, window_bounds = array<i64: 2, 4, 256>}]} {
    %c0 = arith.constant 0 : index
    %c0_0 = arith.constant 0 : index
    %0 = vector.load %arg2[%c0, %c0_0] : memref<8x26xf32, #tpu.memory_space<vmem>>, vector<8x26xf32>
    %1 = vector.extract_strided_slice %0 {offsets = [0, 0], sizes = [8, 4], strides = [1, 1]} : vector<8x26xf32> to vector<8x4xf32>
    %2 = vector.extract_strided_slice %0 {offsets = [0, 4], sizes = [8, 1], strides = [1, 1]} : vector<8x26xf32> to vector<8x1xf32>
    %3 = vector.extract_strided_slice %0 {offsets = [0, 5], sizes = [8, 9], strides = [1, 1]} : vector<8x26xf32> to vector<8x9xf32>
    %4 = vector.extract_strided_slice %0 {offsets = [0, 14], sizes = [8, 1], strides = [1, 1]} : vector<8x26xf32> to vector<8x1xf32>
    %5 = vector.extract_strided_slice %0 {offsets = [0, 15], sizes = [4, 8], strides = [1, 1]} : vector<8x26xf32> to vector<4x8xf32>
    %6 = vector.extract_strided_slice %0 {offsets = [0, 23], sizes = [4, 1], strides = [1, 1]} : vector<8x26xf32> to vector<4x1xf32>
    %7 = vector.extract_strided_slice %0 {offsets = [0, 24], sizes = [4, 1], strides = [1, 1]} : vector<8x26xf32> to vector<4x1xf32>
    %8 = vector.extract_strided_slice %0 {offsets = [0, 25], sizes = [4, 1], strides = [1, 1]} : vector<8x26xf32> to vector<4x1xf32>
    %c0_1 = arith.constant 0 : index
    %c0_2 = arith.constant 0 : index
    %9 = vector.load %arg3[%c0_1, %c0_2] : memref<4x256xf32, #tpu.memory_space<vmem>>, vector<4x256xf32>
    %10 = vector.extract_strided_slice %9 {offsets = [0, 0], sizes = [1, 256], strides = [1, 1]} : vector<4x256xf32> to vector<1x256xf32>
    %11 = vector.extract_strided_slice %9 {offsets = [1, 0], sizes = [1, 256], strides = [1, 1]} : vector<4x256xf32> to vector<1x256xf32>
    %12 = vector.extract_strided_slice %9 {offsets = [2, 0], sizes = [1, 256], strides = [1, 1]} : vector<4x256xf32> to vector<1x256xf32>
    %13 = vector.extract_strided_slice %9 {offsets = [3, 0], sizes = [1, 256], strides = [1, 1]} : vector<4x256xf32> to vector<1x256xf32>
    %c0_3 = arith.constant 0 : index
    %c0_4 = arith.constant 0 : index
    %c0_5 = arith.constant 0 : index
    %14 = vector.load %arg1[%c0_3, %c0_4, %c0_5] : memref<2x4x256xf32, #tpu.memory_space<vmem>>, vector<1x4x256xf32>
    %15 = vector.shape_cast %14 : vector<1x4x256xf32> to vector<4x256xf32>
    %cst = arith.constant dense<0.000000e+00> : vector<256xf32>
    %16 = vector.multi_reduction <add>, %15, %cst [0] : vector<4x256xf32> to vector<256xf32>
    %17 = vector.shape_cast %16 : vector<256xf32> to vector<1x256xf32>
    %cst_6 = arith.constant 4.000000e+00 : f32
    %18 = vector.broadcast %cst_6 : f32 to vector<1x256xf32>
    %19 = arith.divf %17, %18 : vector<1x256xf32>
    %20 = arith.mulf %15, %15 : vector<4x256xf32>
    %cst_7 = arith.constant dense<0.000000e+00> : vector<256xf32>
    %21 = vector.multi_reduction <add>, %20, %cst_7 [0] : vector<4x256xf32> to vector<256xf32>
    %22 = vector.shape_cast %21 : vector<256xf32> to vector<1x256xf32>
    %cst_8 = arith.constant 4.000000e+00 : f32
    %23 = vector.broadcast %cst_8 : f32 to vector<1x256xf32>
    %24 = arith.divf %22, %23 : vector<1x256xf32>
    %25 = arith.mulf %19, %19 : vector<1x256xf32>
    %26 = arith.subf %24, %25 : vector<1x256xf32>
    %cst_9 = arith.constant 9.99999997E-7 : f32
    %27 = vector.broadcast %cst_9 : f32 to vector<1x256xf32>
    %28 = arith.addf %26, %27 : vector<1x256xf32>
    %29 = math.rsqrt %28 : vector<1x256xf32>
    %30 = vector.broadcast %19 : vector<1x256xf32> to vector<4x256xf32>
    %31 = arith.subf %15, %30 : vector<4x256xf32>
    %32 = vector.broadcast %29 : vector<1x256xf32> to vector<4x256xf32>
    %33 = arith.mulf %31, %32 : vector<4x256xf32>
    %34 = vector.broadcast %6 : vector<4x1xf32> to vector<4x256xf32>
    %35 = arith.mulf %33, %34 : vector<4x256xf32>
    %36 = vector.broadcast %7 : vector<4x1xf32> to vector<4x256xf32>
    %37 = arith.addf %35, %36 : vector<4x256xf32>
    %38 = vector.extract_strided_slice %1 {offsets = [0, 0], sizes = [8, 1], strides = [1, 1]} : vector<8x4xf32> to vector<8x1xf32>
    %39 = vector.extract_strided_slice %37 {offsets = [0, 0], sizes = [1, 256], strides = [1, 1]} : vector<4x256xf32> to vector<1x256xf32>
    %40 = vector.broadcast %38 : vector<8x1xf32> to vector<8x256xf32>
    %41 = vector.broadcast %39 : vector<1x256xf32> to vector<8x256xf32>
    %42 = arith.mulf %40, %41 : vector<8x256xf32>
    %43 = vector.extract_strided_slice %1 {offsets = [0, 1], sizes = [8, 1], strides = [1, 1]} : vector<8x4xf32> to vector<8x1xf32>
    %44 = vector.extract_strided_slice %37 {offsets = [1, 0], sizes = [1, 256], strides = [1, 1]} : vector<4x256xf32> to vector<1x256xf32>
    %45 = vector.broadcast %43 : vector<8x1xf32> to vector<8x256xf32>
    %46 = vector.broadcast %44 : vector<1x256xf32> to vector<8x256xf32>
    %47 = arith.mulf %45, %46 : vector<8x256xf32>
    %48 = arith.addf %42, %47 : vector<8x256xf32>
    %49 = vector.extract_strided_slice %1 {offsets = [0, 2], sizes = [8, 1], strides = [1, 1]} : vector<8x4xf32> to vector<8x1xf32>
    %50 = vector.extract_strided_slice %37 {offsets = [2, 0], sizes = [1, 256], strides = [1, 1]} : vector<4x256xf32> to vector<1x256xf32>
    %51 = vector.broadcast %49 : vector<8x1xf32> to vector<8x256xf32>
    %52 = vector.broadcast %50 : vector<1x256xf32> to vector<8x256xf32>
    %53 = arith.mulf %51, %52 : vector<8x256xf32>
    %54 = arith.addf %48, %53 : vector<8x256xf32>
    %55 = vector.extract_strided_slice %1 {offsets = [0, 3], sizes = [8, 1], strides = [1, 1]} : vector<8x4xf32> to vector<8x1xf32>
    %56 = vector.extract_strided_slice %37 {offsets = [3, 0], sizes = [1, 256], strides = [1, 1]} : vector<4x256xf32> to vector<1x256xf32>
    %57 = vector.broadcast %55 : vector<8x1xf32> to vector<8x256xf32>
    %58 = vector.broadcast %56 : vector<1x256xf32> to vector<8x256xf32>
    %59 = arith.mulf %57, %58 : vector<8x256xf32>
    %60 = arith.addf %54, %59 : vector<8x256xf32>
    %61 = vector.broadcast %2 : vector<8x1xf32> to vector<8x256xf32>
    %62 = arith.addf %60, %61 : vector<8x256xf32>
    %63 = vector.extract_strided_slice %62 {offsets = [0, 255], sizes = [8, 1], strides = [1, 1]} : vector<8x256xf32> to vector<8x1xf32>
    %64 = vector.extract_strided_slice %62 {offsets = [0, 0], sizes = [8, 255], strides = [1, 1]} : vector<8x256xf32> to vector<8x255xf32>
    %65 = tpu.concatenate %63, %64 in 1 : vector<8x1xf32>, vector<8x255xf32> -> vector<8x256xf32>
    %66 = vector.broadcast %10 : vector<1x256xf32> to vector<8x256xf32>
    %67 = arith.mulf %65, %66 : vector<8x256xf32>
    %68 = vector.extract_strided_slice %62 {offsets = [0, 1], sizes = [8, 255], strides = [1, 1]} : vector<8x256xf32> to vector<8x255xf32>
    %69 = vector.extract_strided_slice %62 {offsets = [0, 0], sizes = [8, 1], strides = [1, 1]} : vector<8x256xf32> to vector<8x1xf32>
    %70 = tpu.concatenate %68, %69 in 1 : vector<8x255xf32>, vector<8x1xf32> -> vector<8x256xf32>
    %71 = vector.broadcast %11 : vector<1x256xf32> to vector<8x256xf32>
    %72 = arith.mulf %70, %71 : vector<8x256xf32>
    %73 = vector.extract_strided_slice %3 {offsets = [0, 0], sizes = [8, 1], strides = [1, 1]} : vector<8x9xf32> to vector<8x1xf32>
    %74 = vector.extract_strided_slice %67 {offsets = [0, 240], sizes = [8, 16], strides = [1, 1]} : vector<8x256xf32> to vector<8x16xf32>
    %75 = vector.extract_strided_slice %67 {offsets = [0, 0], sizes = [8, 240], strides = [1, 1]} : vector<8x256xf32> to vector<8x240xf32>
    %76 = tpu.concatenate %74, %75 in 1 : vector<8x16xf32>, vector<8x240xf32> -> vector<8x256xf32>
    %77 = vector.broadcast %73 : vector<8x1xf32> to vector<8x256xf32>
    %78 = arith.mulf %77, %76 : vector<8x256xf32>
    %79 = vector.extract_strided_slice %3 {offsets = [0, 1], sizes = [8, 1], strides = [1, 1]} : vector<8x9xf32> to vector<8x1xf32>
    %80 = vector.extract_strided_slice %62 {offsets = [0, 240], sizes = [8, 16], strides = [1, 1]} : vector<8x256xf32> to vector<8x16xf32>
    %81 = vector.extract_strided_slice %62 {offsets = [0, 0], sizes = [8, 240], strides = [1, 1]} : vector<8x256xf32> to vector<8x240xf32>
    %82 = tpu.concatenate %80, %81 in 1 : vector<8x16xf32>, vector<8x240xf32> -> vector<8x256xf32>
    %83 = vector.broadcast %79 : vector<8x1xf32> to vector<8x256xf32>
    %84 = arith.mulf %83, %82 : vector<8x256xf32>
    %85 = arith.addf %78, %84 : vector<8x256xf32>
    %86 = vector.extract_strided_slice %3 {offsets = [0, 2], sizes = [8, 1], strides = [1, 1]} : vector<8x9xf32> to vector<8x1xf32>
    %87 = vector.extract_strided_slice %72 {offsets = [0, 240], sizes = [8, 16], strides = [1, 1]} : vector<8x256xf32> to vector<8x16xf32>
    %88 = vector.extract_strided_slice %72 {offsets = [0, 0], sizes = [8, 240], strides = [1, 1]} : vector<8x256xf32> to vector<8x240xf32>
    %89 = tpu.concatenate %87, %88 in 1 : vector<8x16xf32>, vector<8x240xf32> -> vector<8x256xf32>
    %90 = vector.broadcast %86 : vector<8x1xf32> to vector<8x256xf32>
    %91 = arith.mulf %90, %89 : vector<8x256xf32>
    %92 = arith.addf %85, %91 : vector<8x256xf32>
    %93 = vector.broadcast %12 : vector<1x256xf32> to vector<8x256xf32>
    %94 = arith.mulf %92, %93 : vector<8x256xf32>
    %95 = vector.extract_strided_slice %3 {offsets = [0, 3], sizes = [8, 1], strides = [1, 1]} : vector<8x9xf32> to vector<8x1xf32>
    %96 = vector.broadcast %95 : vector<8x1xf32> to vector<8x256xf32>
    %97 = arith.mulf %96, %67 : vector<8x256xf32>
    %98 = vector.extract_strided_slice %3 {offsets = [0, 4], sizes = [8, 1], strides = [1, 1]} : vector<8x9xf32> to vector<8x1xf32>
    %99 = vector.broadcast %98 : vector<8x1xf32> to vector<8x256xf32>
    %100 = arith.mulf %99, %62 : vector<8x256xf32>
    %101 = arith.addf %97, %100 : vector<8x256xf32>
    %102 = vector.extract_strided_slice %3 {offsets = [0, 5], sizes = [8, 1], strides = [1, 1]} : vector<8x9xf32> to vector<8x1xf32>
    %103 = vector.broadcast %102 : vector<8x1xf32> to vector<8x256xf32>
    %104 = arith.mulf %103, %72 : vector<8x256xf32>
    %105 = arith.addf %101, %104 : vector<8x256xf32>
    %106 = arith.addf %94, %105 : vector<8x256xf32>
    %107 = vector.extract_strided_slice %3 {offsets = [0, 6], sizes = [8, 1], strides = [1, 1]} : vector<8x9xf32> to vector<8x1xf32>
    %108 = vector.extract_strided_slice %67 {offsets = [0, 16], sizes = [8, 240], strides = [1, 1]} : vector<8x256xf32> to vector<8x240xf32>
    %109 = vector.extract_strided_slice %67 {offsets = [0, 0], sizes = [8, 16], strides = [1, 1]} : vector<8x256xf32> to vector<8x16xf32>
    %110 = tpu.concatenate %108, %109 in 1 : vector<8x240xf32>, vector<8x16xf32> -> vector<8x256xf32>
    %111 = vector.broadcast %107 : vector<8x1xf32> to vector<8x256xf32>
    %112 = arith.mulf %111, %110 : vector<8x256xf32>
    %113 = vector.extract_strided_slice %3 {offsets = [0, 7], sizes = [8, 1], strides = [1, 1]} : vector<8x9xf32> to vector<8x1xf32>
    %114 = vector.extract_strided_slice %62 {offsets = [0, 16], sizes = [8, 240], strides = [1, 1]} : vector<8x256xf32> to vector<8x240xf32>
    %115 = vector.extract_strided_slice %62 {offsets = [0, 0], sizes = [8, 16], strides = [1, 1]} : vector<8x256xf32> to vector<8x16xf32>
    %116 = tpu.concatenate %114, %115 in 1 : vector<8x240xf32>, vector<8x16xf32> -> vector<8x256xf32>
    %117 = vector.broadcast %113 : vector<8x1xf32> to vector<8x256xf32>
    %118 = arith.mulf %117, %116 : vector<8x256xf32>
    %119 = arith.addf %112, %118 : vector<8x256xf32>
    %120 = vector.extract_strided_slice %3 {offsets = [0, 8], sizes = [8, 1], strides = [1, 1]} : vector<8x9xf32> to vector<8x1xf32>
    %121 = vector.extract_strided_slice %72 {offsets = [0, 16], sizes = [8, 240], strides = [1, 1]} : vector<8x256xf32> to vector<8x240xf32>
    %122 = vector.extract_strided_slice %72 {offsets = [0, 0], sizes = [8, 16], strides = [1, 1]} : vector<8x256xf32> to vector<8x16xf32>
    %123 = tpu.concatenate %121, %122 in 1 : vector<8x240xf32>, vector<8x16xf32> -> vector<8x256xf32>
    %124 = vector.broadcast %120 : vector<8x1xf32> to vector<8x256xf32>
    %125 = arith.mulf %124, %123 : vector<8x256xf32>
    %126 = arith.addf %119, %125 : vector<8x256xf32>
    %127 = vector.broadcast %13 : vector<1x256xf32> to vector<8x256xf32>
    %128 = arith.mulf %126, %127 : vector<8x256xf32>
    %129 = arith.addf %106, %128 : vector<8x256xf32>
    %130 = vector.broadcast %4 : vector<8x1xf32> to vector<8x256xf32>
    %131 = arith.addf %129, %130 : vector<8x256xf32>
    %cst_10 = arith.constant 0.000000e+00 : f32
    %132 = vector.broadcast %cst_10 : f32 to vector<8x256xf32>
    %133 = arith.maximumf %131, %132 : vector<8x256xf32>
    %134 = vector.extract_strided_slice %5 {offsets = [0, 0], sizes = [4, 1], strides = [1, 1]} : vector<4x8xf32> to vector<4x1xf32>
    %135 = vector.extract_strided_slice %133 {offsets = [0, 0], sizes = [1, 256], strides = [1, 1]} : vector<8x256xf32> to vector<1x256xf32>
    %136 = vector.broadcast %134 : vector<4x1xf32> to vector<4x256xf32>
    %137 = vector.broadcast %135 : vector<1x256xf32> to vector<4x256xf32>
    %138 = arith.mulf %136, %137 : vector<4x256xf32>
    %139 = vector.extract_strided_slice %5 {offsets = [0, 1], sizes = [4, 1], strides = [1, 1]} : vector<4x8xf32> to vector<4x1xf32>
    %140 = vector.extract_strided_slice %133 {offsets = [1, 0], sizes = [1, 256], strides = [1, 1]} : vector<8x256xf32> to vector<1x256xf32>
    %141 = vector.broadcast %139 : vector<4x1xf32> to vector<4x256xf32>
    %142 = vector.broadcast %140 : vector<1x256xf32> to vector<4x256xf32>
    %143 = arith.mulf %141, %142 : vector<4x256xf32>
    %144 = arith.addf %138, %143 : vector<4x256xf32>
    %145 = vector.extract_strided_slice %5 {offsets = [0, 2], sizes = [4, 1], strides = [1, 1]} : vector<4x8xf32> to vector<4x1xf32>
    %146 = vector.extract_strided_slice %133 {offsets = [2, 0], sizes = [1, 256], strides = [1, 1]} : vector<8x256xf32> to vector<1x256xf32>
    %147 = vector.broadcast %145 : vector<4x1xf32> to vector<4x256xf32>
    %148 = vector.broadcast %146 : vector<1x256xf32> to vector<4x256xf32>
    %149 = arith.mulf %147, %148 : vector<4x256xf32>
    %150 = arith.addf %144, %149 : vector<4x256xf32>
    %151 = vector.extract_strided_slice %5 {offsets = [0, 3], sizes = [4, 1], strides = [1, 1]} : vector<4x8xf32> to vector<4x1xf32>
    %152 = vector.extract_strided_slice %133 {offsets = [3, 0], sizes = [1, 256], strides = [1, 1]} : vector<8x256xf32> to vector<1x256xf32>
    %153 = vector.broadcast %151 : vector<4x1xf32> to vector<4x256xf32>
    %154 = vector.broadcast %152 : vector<1x256xf32> to vector<4x256xf32>
    %155 = arith.mulf %153, %154 : vector<4x256xf32>
    %156 = arith.addf %150, %155 : vector<4x256xf32>
    %157 = vector.extract_strided_slice %5 {offsets = [0, 4], sizes = [4, 1], strides = [1, 1]} : vector<4x8xf32> to vector<4x1xf32>
    %158 = vector.extract_strided_slice %133 {offsets = [4, 0], sizes = [1, 256], strides = [1, 1]} : vector<8x256xf32> to vector<1x256xf32>
    %159 = vector.broadcast %157 : vector<4x1xf32> to vector<4x256xf32>
    %160 = vector.broadcast %158 : vector<1x256xf32> to vector<4x256xf32>
    %161 = arith.mulf %159, %160 : vector<4x256xf32>
    %162 = arith.addf %156, %161 : vector<4x256xf32>
    %163 = vector.extract_strided_slice %5 {offsets = [0, 5], sizes = [4, 1], strides = [1, 1]} : vector<4x8xf32> to vector<4x1xf32>
    %164 = vector.extract_strided_slice %133 {offsets = [5, 0], sizes = [1, 256], strides = [1, 1]} : vector<8x256xf32> to vector<1x256xf32>
    %165 = vector.broadcast %163 : vector<4x1xf32> to vector<4x256xf32>
    %166 = vector.broadcast %164 : vector<1x256xf32> to vector<4x256xf32>
    %167 = arith.mulf %165, %166 : vector<4x256xf32>
    %168 = arith.addf %162, %167 : vector<4x256xf32>
    %169 = vector.extract_strided_slice %5 {offsets = [0, 6], sizes = [4, 1], strides = [1, 1]} : vector<4x8xf32> to vector<4x1xf32>
    %170 = vector.extract_strided_slice %133 {offsets = [6, 0], sizes = [1, 256], strides = [1, 1]} : vector<8x256xf32> to vector<1x256xf32>
    %171 = vector.broadcast %169 : vector<4x1xf32> to vector<4x256xf32>
    %172 = vector.broadcast %170 : vector<1x256xf32> to vector<4x256xf32>
    %173 = arith.mulf %171, %172 : vector<4x256xf32>
    %174 = arith.addf %168, %173 : vector<4x256xf32>
    %175 = vector.extract_strided_slice %5 {offsets = [0, 7], sizes = [4, 1], strides = [1, 1]} : vector<4x8xf32> to vector<4x1xf32>
    %176 = vector.extract_strided_slice %133 {offsets = [7, 0], sizes = [1, 256], strides = [1, 1]} : vector<8x256xf32> to vector<1x256xf32>
    %177 = vector.broadcast %175 : vector<4x1xf32> to vector<4x256xf32>
    %178 = vector.broadcast %176 : vector<1x256xf32> to vector<4x256xf32>
    %179 = arith.mulf %177, %178 : vector<4x256xf32>
    %180 = arith.addf %174, %179 : vector<4x256xf32>
    %181 = vector.broadcast %8 : vector<4x1xf32> to vector<4x256xf32>
    %182 = arith.addf %180, %181 : vector<4x256xf32>
    %c0_11 = arith.constant 0 : index
    %c0_12 = arith.constant 0 : index
    %c0_13 = arith.constant 0 : index
    %183 = vector.load %arg4[%c0_11, %c0_12, %c0_13] : memref<2x4x256xf32, #tpu.memory_space<vmem>>, vector<1x4x256xf32>
    %184 = vector.shape_cast %183 : vector<1x4x256xf32> to vector<4x256xf32>
    %185 = vector.shape_cast %182 : vector<4x256xf32> to vector<1x4x256xf32>
    tpu.vector_store %arg4[%c0_11, %c0_12, %c0_13], %185 {strides = array<i32>} : memref<2x4x256xf32, #tpu.memory_space<vmem>>, vector<1x4x256xf32>,
    %c1 = arith.constant 1 : index
    %c0_14 = arith.constant 0 : index
    %c0_15 = arith.constant 0 : index
    %186 = vector.load %arg1[%c1, %c0_14, %c0_15] : memref<2x4x256xf32, #tpu.memory_space<vmem>>, vector<1x4x256xf32>
    %187 = vector.shape_cast %186 : vector<1x4x256xf32> to vector<4x256xf32>
    %cst_16 = arith.constant dense<0.000000e+00> : vector<256xf32>
    %188 = vector.multi_reduction <add>, %187, %cst_16 [0] : vector<4x256xf32> to vector<256xf32>
    %189 = vector.shape_cast %188 : vector<256xf32> to vector<1x256xf32>
    %cst_17 = arith.constant 4.000000e+00 : f32
    %190 = vector.broadcast %cst_17 : f32 to vector<1x256xf32>
    %191 = arith.divf %189, %190 : vector<1x256xf32>
    %192 = arith.mulf %187, %187 : vector<4x256xf32>
    %cst_18 = arith.constant dense<0.000000e+00> : vector<256xf32>
    %193 = vector.multi_reduction <add>, %192, %cst_18 [0] : vector<4x256xf32> to vector<256xf32>
    %194 = vector.shape_cast %193 : vector<256xf32> to vector<1x256xf32>
    %cst_19 = arith.constant 4.000000e+00 : f32
    %195 = vector.broadcast %cst_19 : f32 to vector<1x256xf32>
    %196 = arith.divf %194, %195 : vector<1x256xf32>
    %197 = arith.mulf %191, %191 : vector<1x256xf32>
    %198 = arith.subf %196, %197 : vector<1x256xf32>
    %cst_20 = arith.constant 9.99999997E-7 : f32
    %199 = vector.broadcast %cst_20 : f32 to vector<1x256xf32>
    %200 = arith.addf %198, %199 : vector<1x256xf32>
    %201 = math.rsqrt %200 : vector<1x256xf32>
    %202 = vector.broadcast %191 : vector<1x256xf32> to vector<4x256xf32>
    %203 = arith.subf %187, %202 : vector<4x256xf32>
    %204 = vector.broadcast %201 : vector<1x256xf32> to vector<4x256xf32>
    %205 = arith.mulf %203, %204 : vector<4x256xf32>
    %206 = vector.broadcast %6 : vector<4x1xf32> to vector<4x256xf32>
    %207 = arith.mulf %205, %206 : vector<4x256xf32>
    %208 = vector.broadcast %7 : vector<4x1xf32> to vector<4x256xf32>
    %209 = arith.addf %207, %208 : vector<4x256xf32>
    %210 = vector.extract_strided_slice %1 {offsets = [0, 0], sizes = [8, 1], strides = [1, 1]} : vector<8x4xf32> to vector<8x1xf32>
    %211 = vector.extract_strided_slice %209 {offsets = [0, 0], sizes = [1, 256], strides = [1, 1]} : vector<4x256xf32> to vector<1x256xf32>
    %212 = vector.broadcast %210 : vector<8x1xf32> to vector<8x256xf32>
    %213 = vector.broadcast %211 : vector<1x256xf32> to vector<8x256xf32>
    %214 = arith.mulf %212, %213 : vector<8x256xf32>
    %215 = vector.extract_strided_slice %1 {offsets = [0, 1], sizes = [8, 1], strides = [1, 1]} : vector<8x4xf32> to vector<8x1xf32>
    %216 = vector.extract_strided_slice %209 {offsets = [1, 0], sizes = [1, 256], strides = [1, 1]} : vector<4x256xf32> to vector<1x256xf32>
    %217 = vector.broadcast %215 : vector<8x1xf32> to vector<8x256xf32>
    %218 = vector.broadcast %216 : vector<1x256xf32> to vector<8x256xf32>
    %219 = arith.mulf %217, %218 : vector<8x256xf32>
    %220 = arith.addf %214, %219 : vector<8x256xf32>
    %221 = vector.extract_strided_slice %1 {offsets = [0, 2], sizes = [8, 1], strides = [1, 1]} : vector<8x4xf32> to vector<8x1xf32>
    %222 = vector.extract_strided_slice %209 {offsets = [2, 0], sizes = [1, 256], strides = [1, 1]} : vector<4x256xf32> to vector<1x256xf32>
    %223 = vector.broadcast %221 : vector<8x1xf32> to vector<8x256xf32>
    %224 = vector.broadcast %222 : vector<1x256xf32> to vector<8x256xf32>
    %225 = arith.mulf %223, %224 : vector<8x256xf32>
    %226 = arith.addf %220, %225 : vector<8x256xf32>
    %227 = vector.extract_strided_slice %1 {offsets = [0, 3], sizes = [8, 1], strides = [1, 1]} : vector<8x4xf32> to vector<8x1xf32>
    %228 = vector.extract_strided_slice %209 {offsets = [3, 0], sizes = [1, 256], strides = [1, 1]} : vector<4x256xf32> to vector<1x256xf32>
    %229 = vector.broadcast %227 : vector<8x1xf32> to vector<8x256xf32>
    %230 = vector.broadcast %228 : vector<1x256xf32> to vector<8x256xf32>
    %231 = arith.mulf %229, %230 : vector<8x256xf32>
    %232 = arith.addf %226, %231 : vector<8x256xf32>
    %233 = vector.broadcast %2 : vector<8x1xf32> to vector<8x256xf32>
    %234 = arith.addf %232, %233 : vector<8x256xf32>
    %235 = vector.extract_strided_slice %234 {offsets = [0, 255], sizes = [8, 1], strides = [1, 1]} : vector<8x256xf32> to vector<8x1xf32>
    %236 = vector.extract_strided_slice %234 {offsets = [0, 0], sizes = [8, 255], strides = [1, 1]} : vector<8x256xf32> to vector<8x255xf32>
    %237 = tpu.concatenate %235, %236 in 1 : vector<8x1xf32>, vector<8x255xf32> -> vector<8x256xf32>
    %238 = vector.broadcast %10 : vector<1x256xf32> to vector<8x256xf32>
    %239 = arith.mulf %237, %238 : vector<8x256xf32>
    %240 = vector.extract_strided_slice %234 {offsets = [0, 1], sizes = [8, 255], strides = [1, 1]} : vector<8x256xf32> to vector<8x255xf32>
    %241 = vector.extract_strided_slice %234 {offsets = [0, 0], sizes = [8, 1], strides = [1, 1]} : vector<8x256xf32> to vector<8x1xf32>
    %242 = tpu.concatenate %240, %241 in 1 : vector<8x255xf32>, vector<8x1xf32> -> vector<8x256xf32>
    %243 = vector.broadcast %11 : vector<1x256xf32> to vector<8x256xf32>
    %244 = arith.mulf %242, %243 : vector<8x256xf32>
    %245 = vector.extract_strided_slice %3 {offsets = [0, 0], sizes = [8, 1], strides = [1, 1]} : vector<8x9xf32> to vector<8x1xf32>
    %246 = vector.extract_strided_slice %239 {offsets = [0, 240], sizes = [8, 16], strides = [1, 1]} : vector<8x256xf32> to vector<8x16xf32>
    %247 = vector.extract_strided_slice %239 {offsets = [0, 0], sizes = [8, 240], strides = [1, 1]} : vector<8x256xf32> to vector<8x240xf32>
    %248 = tpu.concatenate %246, %247 in 1 : vector<8x16xf32>, vector<8x240xf32> -> vector<8x256xf32>
    %249 = vector.broadcast %245 : vector<8x1xf32> to vector<8x256xf32>
    %250 = arith.mulf %249, %248 : vector<8x256xf32>
    %251 = vector.extract_strided_slice %3 {offsets = [0, 1], sizes = [8, 1], strides = [1, 1]} : vector<8x9xf32> to vector<8x1xf32>
    %252 = vector.extract_strided_slice %234 {offsets = [0, 240], sizes = [8, 16], strides = [1, 1]} : vector<8x256xf32> to vector<8x16xf32>
    %253 = vector.extract_strided_slice %234 {offsets = [0, 0], sizes = [8, 240], strides = [1, 1]} : vector<8x256xf32> to vector<8x240xf32>
    %254 = tpu.concatenate %252, %253 in 1 : vector<8x16xf32>, vector<8x240xf32> -> vector<8x256xf32>
    %255 = vector.broadcast %251 : vector<8x1xf32> to vector<8x256xf32>
    %256 = arith.mulf %255, %254 : vector<8x256xf32>
    %257 = arith.addf %250, %256 : vector<8x256xf32>
    %258 = vector.extract_strided_slice %3 {offsets = [0, 2], sizes = [8, 1], strides = [1, 1]} : vector<8x9xf32> to vector<8x1xf32>
    %259 = vector.extract_strided_slice %244 {offsets = [0, 240], sizes = [8, 16], strides = [1, 1]} : vector<8x256xf32> to vector<8x16xf32>
    %260 = vector.extract_strided_slice %244 {offsets = [0, 0], sizes = [8, 240], strides = [1, 1]} : vector<8x256xf32> to vector<8x240xf32>
    %261 = tpu.concatenate %259, %260 in 1 : vector<8x16xf32>, vector<8x240xf32> -> vector<8x256xf32>
    %262 = vector.broadcast %258 : vector<8x1xf32> to vector<8x256xf32>
    %263 = arith.mulf %262, %261 : vector<8x256xf32>
    %264 = arith.addf %257, %263 : vector<8x256xf32>
    %265 = vector.broadcast %12 : vector<1x256xf32> to vector<8x256xf32>
    %266 = arith.mulf %264, %265 : vector<8x256xf32>
    %267 = vector.extract_strided_slice %3 {offsets = [0, 3], sizes = [8, 1], strides = [1, 1]} : vector<8x9xf32> to vector<8x1xf32>
    %268 = vector.broadcast %267 : vector<8x1xf32> to vector<8x256xf32>
    %269 = arith.mulf %268, %239 : vector<8x256xf32>
    %270 = vector.extract_strided_slice %3 {offsets = [0, 4], sizes = [8, 1], strides = [1, 1]} : vector<8x9xf32> to vector<8x1xf32>
    %271 = vector.broadcast %270 : vector<8x1xf32> to vector<8x256xf32>
    %272 = arith.mulf %271, %234 : vector<8x256xf32>
    %273 = arith.addf %269, %272 : vector<8x256xf32>
    %274 = vector.extract_strided_slice %3 {offsets = [0, 5], sizes = [8, 1], strides = [1, 1]} : vector<8x9xf32> to vector<8x1xf32>
    %275 = vector.broadcast %274 : vector<8x1xf32> to vector<8x256xf32>
    %276 = arith.mulf %275, %244 : vector<8x256xf32>
    %277 = arith.addf %273, %276 : vector<8x256xf32>
    %278 = arith.addf %266, %277 : vector<8x256xf32>
    %279 = vector.extract_strided_slice %3 {offsets = [0, 6], sizes = [8, 1], strides = [1, 1]} : vector<8x9xf32> to vector<8x1xf32>
    %280 = vector.extract_strided_slice %239 {offsets = [0, 16], sizes = [8, 240], strides = [1, 1]} : vector<8x256xf32> to vector<8x240xf32>
    %281 = vector.extract_strided_slice %239 {offsets = [0, 0], sizes = [8, 16], strides = [1, 1]} : vector<8x256xf32> to vector<8x16xf32>
    %282 = tpu.concatenate %280, %281 in 1 : vector<8x240xf32>, vector<8x16xf32> -> vector<8x256xf32>
    %283 = vector.broadcast %279 : vector<8x1xf32> to vector<8x256xf32>
    %284 = arith.mulf %283, %282 : vector<8x256xf32>
    %285 = vector.extract_strided_slice %3 {offsets = [0, 7], sizes = [8, 1], strides = [1, 1]} : vector<8x9xf32> to vector<8x1xf32>
    %286 = vector.extract_strided_slice %234 {offsets = [0, 16], sizes = [8, 240], strides = [1, 1]} : vector<8x256xf32> to vector<8x240xf32>
    %287 = vector.extract_strided_slice %234 {offsets = [0, 0], sizes = [8, 16], strides = [1, 1]} : vector<8x256xf32> to vector<8x16xf32>
    %288 = tpu.concatenate %286, %287 in 1 : vector<8x240xf32>, vector<8x16xf32> -> vector<8x256xf32>
    %289 = vector.broadcast %285 : vector<8x1xf32> to vector<8x256xf32>
    %290 = arith.mulf %289, %288 : vector<8x256xf32>
    %291 = arith.addf %284, %290 : vector<8x256xf32>
    %292 = vector.extract_strided_slice %3 {offsets = [0, 8], sizes = [8, 1], strides = [1, 1]} : vector<8x9xf32> to vector<8x1xf32>
    %293 = vector.extract_strided_slice %244 {offsets = [0, 16], sizes = [8, 240], strides = [1, 1]} : vector<8x256xf32> to vector<8x240xf32>
    %294 = vector.extract_strided_slice %244 {offsets = [0, 0], sizes = [8, 16], strides = [1, 1]} : vector<8x256xf32> to vector<8x16xf32>
    %295 = tpu.concatenate %293, %294 in 1 : vector<8x240xf32>, vector<8x16xf32> -> vector<8x256xf32>
    %296 = vector.broadcast %292 : vector<8x1xf32> to vector<8x256xf32>
    %297 = arith.mulf %296, %295 : vector<8x256xf32>
    %298 = arith.addf %291, %297 : vector<8x256xf32>
    %299 = vector.broadcast %13 : vector<1x256xf32> to vector<8x256xf32>
    %300 = arith.mulf %298, %299 : vector<8x256xf32>
    %301 = arith.addf %278, %300 : vector<8x256xf32>
    %302 = vector.broadcast %4 : vector<8x1xf32> to vector<8x256xf32>
    %303 = arith.addf %301, %302 : vector<8x256xf32>
    %cst_21 = arith.constant 0.000000e+00 : f32
    %304 = vector.broadcast %cst_21 : f32 to vector<8x256xf32>
    %305 = arith.maximumf %303, %304 : vector<8x256xf32>
    %306 = vector.extract_strided_slice %5 {offsets = [0, 0], sizes = [4, 1], strides = [1, 1]} : vector<4x8xf32> to vector<4x1xf32>
    %307 = vector.extract_strided_slice %305 {offsets = [0, 0], sizes = [1, 256], strides = [1, 1]} : vector<8x256xf32> to vector<1x256xf32>
    %308 = vector.broadcast %306 : vector<4x1xf32> to vector<4x256xf32>
    %309 = vector.broadcast %307 : vector<1x256xf32> to vector<4x256xf32>
    %310 = arith.mulf %308, %309 : vector<4x256xf32>
    %311 = vector.extract_strided_slice %5 {offsets = [0, 1], sizes = [4, 1], strides = [1, 1]} : vector<4x8xf32> to vector<4x1xf32>
    %312 = vector.extract_strided_slice %305 {offsets = [1, 0], sizes = [1, 256], strides = [1, 1]} : vector<8x256xf32> to vector<1x256xf32>
    %313 = vector.broadcast %311 : vector<4x1xf32> to vector<4x256xf32>
    %314 = vector.broadcast %312 : vector<1x256xf32> to vector<4x256xf32>
    %315 = arith.mulf %313, %314 : vector<4x256xf32>
    %316 = arith.addf %310, %315 : vector<4x256xf32>
    %317 = vector.extract_strided_slice %5 {offsets = [0, 2], sizes = [4, 1], strides = [1, 1]} : vector<4x8xf32> to vector<4x1xf32>
    %318 = vector.extract_strided_slice %305 {offsets = [2, 0], sizes = [1, 256], strides = [1, 1]} : vector<8x256xf32> to vector<1x256xf32>
    %319 = vector.broadcast %317 : vector<4x1xf32> to vector<4x256xf32>
    %320 = vector.broadcast %318 : vector<1x256xf32> to vector<4x256xf32>
    %321 = arith.mulf %319, %320 : vector<4x256xf32>
    %322 = arith.addf %316, %321 : vector<4x256xf32>
    %323 = vector.extract_strided_slice %5 {offsets = [0, 3], sizes = [4, 1], strides = [1, 1]} : vector<4x8xf32> to vector<4x1xf32>
    %324 = vector.extract_strided_slice %305 {offsets = [3, 0], sizes = [1, 256], strides = [1, 1]} : vector<8x256xf32> to vector<1x256xf32>
    %325 = vector.broadcast %323 : vector<4x1xf32> to vector<4x256xf32>
    %326 = vector.broadcast %324 : vector<1x256xf32> to vector<4x256xf32>
    %327 = arith.mulf %325, %326 : vector<4x256xf32>
    %328 = arith.addf %322, %327 : vector<4x256xf32>
    %329 = vector.extract_strided_slice %5 {offsets = [0, 4], sizes = [4, 1], strides = [1, 1]} : vector<4x8xf32> to vector<4x1xf32>
    %330 = vector.extract_strided_slice %305 {offsets = [4, 0], sizes = [1, 256], strides = [1, 1]} : vector<8x256xf32> to vector<1x256xf32>
    %331 = vector.broadcast %329 : vector<4x1xf32> to vector<4x256xf32>
    %332 = vector.broadcast %330 : vector<1x256xf32> to vector<4x256xf32>
    %333 = arith.mulf %331, %332 : vector<4x256xf32>
    %334 = arith.addf %328, %333 : vector<4x256xf32>
    %335 = vector.extract_strided_slice %5 {offsets = [0, 5], sizes = [4, 1], strides = [1, 1]} : vector<4x8xf32> to vector<4x1xf32>
    %336 = vector.extract_strided_slice %305 {offsets = [5, 0], sizes = [1, 256], strides = [1, 1]} : vector<8x256xf32> to vector<1x256xf32>
    %337 = vector.broadcast %335 : vector<4x1xf32> to vector<4x256xf32>
    %338 = vector.broadcast %336 : vector<1x256xf32> to vector<4x256xf32>
    %339 = arith.mulf %337, %338 : vector<4x256xf32>
    %340 = arith.addf %334, %339 : vector<4x256xf32>
    %341 = vector.extract_strided_slice %5 {offsets = [0, 6], sizes = [4, 1], strides = [1, 1]} : vector<4x8xf32> to vector<4x1xf32>
    %342 = vector.extract_strided_slice %305 {offsets = [6, 0], sizes = [1, 256], strides = [1, 1]} : vector<8x256xf32> to vector<1x256xf32>
    %343 = vector.broadcast %341 : vector<4x1xf32> to vector<4x256xf32>
    %344 = vector.broadcast %342 : vector<1x256xf32> to vector<4x256xf32>
    %345 = arith.mulf %343, %344 : vector<4x256xf32>
    %346 = arith.addf %340, %345 : vector<4x256xf32>
    %347 = vector.extract_strided_slice %5 {offsets = [0, 7], sizes = [4, 1], strides = [1, 1]} : vector<4x8xf32> to vector<4x1xf32>
    %348 = vector.extract_strided_slice %305 {offsets = [7, 0], sizes = [1, 256], strides = [1, 1]} : vector<8x256xf32> to vector<1x256xf32>
    %349 = vector.broadcast %347 : vector<4x1xf32> to vector<4x256xf32>
    %350 = vector.broadcast %348 : vector<1x256xf32> to vector<4x256xf32>
    %351 = arith.mulf %349, %350 : vector<4x256xf32>
    %352 = arith.addf %346, %351 : vector<4x256xf32>
    %353 = vector.broadcast %8 : vector<4x1xf32> to vector<4x256xf32>
    %354 = arith.addf %352, %353 : vector<4x256xf32>
    %c1_22 = arith.constant 1 : index
    %c0_23 = arith.constant 0 : index
    %c0_24 = arith.constant 0 : index
    %355 = vector.load %arg4[%c1_22, %c0_23, %c0_24] : memref<2x4x256xf32, #tpu.memory_space<vmem>>, vector<1x4x256xf32>
    %356 = vector.shape_cast %355 : vector<1x4x256xf32> to vector<4x256xf32>
    %357 = vector.shape_cast %354 : vector<4x256xf32> to vector<1x4x256xf32>
    tpu.vector_store %arg4[%c1_22, %c0_23, %c0_24], %357 {strides = array<i32>} : memref<2x4x256xf32, #tpu.memory_space<vmem>>, vector<1x4x256xf32>,
    return
  }
  func.func @transform_0(%arg0: i32) -> (i32, i32, i32) {
    %c0_i32 = arith.constant 0 : i32
    %c0_i32_0 = arith.constant 0 : i32
    %c0_i32_1 = arith.constant 0 : i32
    return %arg0, %c0_i32, %c0_i32_0 : i32, i32, i32
  }
  func.func @transform_1(%arg0: i32) -> (i32, i32) {
    %c0_i32 = arith.constant 0 : i32
    %c0_i32_0 = arith.constant 0 : i32
    %c0_i32_1 = arith.constant 0 : i32
    return %c0_i32, %c0_i32_0 : i32, i32
  }
  func.func @transform_2(%arg0: i32) -> (i32, i32) {
    %c0_i32 = arith.constant 0 : i32
    %c0_i32_0 = arith.constant 0 : i32
    %c0_i32_1 = arith.constant 0 : i32
    return %c0_i32, %c0_i32_0 : i32, i32
  }
  func.func @transform_3(%arg0: i32) -> (i32, i32, i32) {
    %c0_i32 = arith.constant 0 : i32
    %c0_i32_0 = arith.constant 0 : i32
    %c0_i32_1 = arith.constant 0 : i32
    return %arg0, %c0_i32, %c0_i32_0 : i32, i32, i32
  }
}

</mosaic_0001>

<llo_original>
// kernel: tpu_custom_call.1
$region0: #{tpu_custom_call.1}
  #allocation0 [shape = 'u32[]', space=smem, size = 0x4, offset = 0x4, fixed_abs, tag = 'smem constant byte address 0x4 - core index']
  #allocation1 [shape = 'u32[144,128]{1,0:T(1,128)}', space=vmem, size = 0x12000, scoped, tag = 'internal scratch']
  %s0 = inlined_call_operand.hbm [shape: f32[2,4,256], index: 0, kind: input, shape index: {}]
  %s1 = inlined_call_operand.hbm [shape: f32[8,26], index: 1, kind: input, shape index: {}]
  %s2 = inlined_call_operand.hbm [shape: f32[4,256], index: 2, kind: input, shape index: {}]
  %s3 = inlined_call_operand.hbm [shape: f32[2,4,256], index: 3, kind: output, shape index: {}]
  %s4 = sld [smem:[#allocation0]]
  $region34: #{tpu_custom_call.1} parent=0
    _
  %s6 = ssub.s32 1, %s4
  %s7 = scalar_select 0, %s6, %s4
  $region1: #{tpu_custom_call.1} parent=0
    #allocation2 [shape = 'u8[8192]{0}', space=vmem, size = 0x2000, scoped, tag = 'input window, operand 0, single buffered']
    #allocation3 [shape = 's32[1]{0}', space=sflag, size = 0x4, scoped, tag = 'scoped memory for tpu_custom_call.1']
    #allocation4 [shape = 's32[1]{0}', space=sflag, size = 0x4, scoped, tag = 'scoped memory for tpu_custom_call.1']
    #allocation5 [shape = 'u8[4096]{0}', space=vmem, size = 0x1000, scoped, tag = 'input window, operand 1, single buffered']
    #allocation6 [shape = 's32[1]{0}', space=sflag, size = 0x4, scoped, tag = 'scoped memory for tpu_custom_call.1']
    #allocation7 [shape = 'u8[4096]{0}', space=vmem, size = 0x1000, scoped, tag = 'input window, operand 2, single buffered']
    #allocation8 [shape = 'u8[8192]{0}', space=vmem, size = 0x2000, scoped, tag = 'output window, operand 0, single buffered']
    %8 = vsyncpa [#allocation3], 0
    %9 = vsyncpa [#allocation6], 0
    %10 = vsyncpa [#allocation4], 0
    // Predicated region
    $region2: #{tpu_custom_call.1} parent=1 // pred_check
      _
    $region3: #{tpu_custom_call.1} parent=1 // pred_check_branch
      %12 = sbr.rel (0) target = $region5
    $region4: #{tpu_custom_call.1} parent=1 // pred_region
      %s14 = ssub.s32 256, 256
      %15 = vsyncadd [#allocation3], %s14
      %s16 = sshll.u32 [#allocation2], 4
      %s17 = int_to_ptr.vmem [resolvable:$true] %s16
      %22 = dma.hbm_to_vmem [thread:$0]  %s0, 256, %s17, [#allocation3], 128, 128, 8
    $region5: #{tpu_custom_call.1} parent=1 // pred_fallthru
      _
    // Predicated region
    $region6: #{tpu_custom_call.1} parent=1 // pred_check
      _
    $region7: #{tpu_custom_call.1} parent=1 // pred_check_branch
      %24 = sbr.rel (0) target = $region9
    $region8: #{tpu_custom_call.1} parent=1 // pred_region
      %s26 = ssub.s32 128, 128
      %27 = vsyncadd [#allocation6], %s26
      %s29 = sshll.u32 [#allocation5], 4
      %s30 = int_to_ptr.vmem [resolvable:$true] %s29
      %32 = dma.hbm_to_vmem [thread:$0]  %s1, 128, %s30, [#allocation6]
    $region9: #{tpu_custom_call.1} parent=1 // pred_fallthru
      _
    // Predicated region
    $region10: #{tpu_custom_call.1} parent=1 // pred_check
      _
    $region11: #{tpu_custom_call.1} parent=1 // pred_check_branch
      %34 = sbr.rel (0) target = $region13
    $region12: #{tpu_custom_call.1} parent=1 // pred_region
      %s36 = ssub.s32 128, 128
      %37 = vsyncadd [#allocation6], %s36
      %s39 = sshll.u32 [#allocation7], 4
      %s40 = int_to_ptr.vmem [resolvable:$true] %s39
      %42 = dma.hbm_to_vmem [thread:$0]  %s2, 128, %s40, [#allocation6]
    $region13: #{tpu_custom_call.1} parent=1 // pred_fallthru
      _
    // Predicated region
    $region14: #{tpu_custom_call.1} parent=1 // pred_check
      _
    $region15: #{tpu_custom_call.1} parent=1 // pred_check_branch
      %44 = sbr.rel (0) target = $region17
    $region16: #{tpu_custom_call.1} parent=1 // pred_region
      %45 = dma.done [#allocation3], 256
    $region17: #{tpu_custom_call.1} parent=1 // pred_fallthru
      _
    // Predicated region
    $region18: #{tpu_custom_call.1} parent=1 // pred_check
      _
    $region19: #{tpu_custom_call.1} parent=1 // pred_check_branch
      %47 = sbr.rel (0) target = $region21
    $region20: #{tpu_custom_call.1} parent=1 // pred_region
      %48 = dma.done [#allocation6], 128
    $region21: #{tpu_custom_call.1} parent=1 // pred_fallthru
      _
    // Predicated region
    $region22: #{tpu_custom_call.1} parent=1 // pred_check
      _
    $region23: #{tpu_custom_call.1} parent=1 // pred_check_branch
      %50 = sbr.rel (0) target = $region25
    $region24: #{tpu_custom_call.1} parent=1 // pred_region
      %51 = dma.done [#allocation6], 128
    $region25: #{tpu_custom_call.1} parent=1 // pred_fallthru
      _
    %v52 = vld [vmem:[#allocation5] sm:$0xff]
    %v53 = vld [vmem:[#allocation7] sm:$0xff]
    %v54 = vld [vmem:[#allocation2] sm:$0xff]
    %v56 = vcombine.high %v54, %v54
    %vm58 = vcmask 1043456
    %v59 = vsel %vm58, %v54, 0.0
    %v60 = vrot.slane %v59, 4
    %v61 = vadd.f32 %v59, %v60
    %v62 = vrot.slane %v61, 2
    %v63 = vadd.f32 %v61, %v62
    %v64 = vrot.slane %v63, 1
    %v65 = vadd.f32 %v63, %v64
    %v66 = vsel %vm58, %v56, 0.0
    %v67 = vrot.slane %v66, 4
    %v68 = vadd.f32 %v66, %v67
    %v69 = vrot.slane %v68, 2
    %v70 = vadd.f32 %v68, %v69
    %v71 = vrot.slane %v70, 1
    %v72 = vadd.f32 %v70, %v71
    %v73 = vrcp.pop 4.0
    %v74 = vmul.f32 %v65, %v73
    %v75 = vmul.f32 %v72, %v73
    %v76 = vmul.f32 %v54, %v54
    %v78 = vcombine.high %v76, %v76
    %v80 = vsel %vm58, %v76, 0.0
    %v81 = vrot.slane %v80, 4
    %v82 = vadd.f32 %v80, %v81
    %v83 = vrot.slane %v82, 2
    %v84 = vadd.f32 %v82, %v83
    %v85 = vrot.slane %v84, 1
    %v86 = vadd.f32 %v84, %v85
    %v87 = vsel %vm58, %v78, 0.0
    %v88 = vrot.slane %v87, 4
    %v89 = vadd.f32 %v87, %v88
    %v90 = vrot.slane %v89, 2
    %v91 = vadd.f32 %v89, %v90
    %v92 = vrot.slane %v91, 1
    %v93 = vadd.f32 %v91, %v92
    %v94 = vmul.f32 %v86, %v73
    %v95 = vmul.f32 %v93, %v73
    %v96 = vmul.f32 %v74, %v74
    %v97 = vmul.f32 %v75, %v75
    %v98 = vsub.f32 %v94, %v96
    %v99 = vsub.f32 %v95, %v97
    %v100 = vadd.f32 %v98, 1e-06
    %v101 = vadd.f32 %v99, 1e-06
    %v102 = vrsqrt.pop %v100
    %v103 = vrsqrt.pop %v101
    %v106 = vcombine.low %v74, %v75
    %v108 = vsub.f32 %v54, %v106
    %v111 = vcombine.low %v102, %v103
    %v113 = vmul.f32 %v108, %v111
    %115 = vset.pattern.permute.xlu0 23
    %116 = vperm.xlu0 %115, %v52
    %v117 = vpop.permute.xlu0 %116
    %v119 = vunpack.c.l.s4 839922192
    %v120 = vunpack.c.0.s8 %v119
    %v121 = vlaneseq
    %v122 = vshrl.u32 %v121, 7
    %v123 = vsub.s32 %v120, %v122
    %v124 = vrot.slane %v117, %v123
    %v126 = vmul.f32 %v113, %v124
    %127 = vset.pattern.permute.xlu0 24
    %128 = vperm.xlu0 %127, %v52
    %v129 = vpop.permute.xlu0 %128
    %v131 = vunpack.c.l.s4 839922192
    %v132 = vunpack.c.0.s8 %v131
    %v133 = vlaneseq
    %v134 = vshrl.u32 %v133, 7
    %v135 = vsub.s32 %v132, %v134
    %v136 = vrot.slane %v129, %v135
    %v138 = vadd.f32 %v126, %v136
    %139 = vset.pattern.permute.xlu0 0
    %140 = vperm.xlu0 %139, %v52
    %v141 = vpop.permute.xlu0 %140
    %v144 = vlaneseq
    %v145 = vshrl.u32 %v144, 7
    %v146 = vsub.s32 0, %v145
    %v147 = vrot.slane %v138, %v146
    %v148 = vlaneseq
    %v149 = vshrl.u32 %v148, 7
    %v150 = vsub.s32 4, %v149
    %v151 = vrot.slane %v138, %v150
    %v154 = vlaneseq
    %v155 = vshrl.u32 %v154, 7
    %v156 = vsub.s32 0, %v155
    %v157 = vrot.slane %v147, %v156
    %v158 = vlaneseq
    %v159 = vshrl.u32 %v158, 7
    %v160 = vsub.s32 0, %v159
    %v161 = vrot.slane %v151, %v160
    %v162 = vmul.f32 %v141, %v157
    %v163 = vmul.f32 %v141, %v161
    %164 = vset.pattern.permute.xlu0 1
    %165 = vperm.xlu0 %164, %v52
    %v166 = vpop.permute.xlu0 %165
    %v168 = vlaneseq
    %v169 = vshrl.u32 %v168, 7
    %v170 = vsub.s32 1, %v169
    %v171 = vrot.slane %v138, %v170
    %v172 = vlaneseq
    %v173 = vshrl.u32 %v172, 7
    %v174 = vsub.s32 5, %v173
    %v175 = vrot.slane %v138, %v174
    %v178 = vlaneseq
    %v179 = vshrl.u32 %v178, 7
    %v180 = vsub.s32 1, %v179
    %v181 = vrot.slane %v171, %v180
    %v182 = vlaneseq
    %v183 = vshrl.u32 %v182, 7
    %v184 = vsub.s32 1, %v183
    %v185 = vrot.slane %v175, %v184
    %v186 = vmul.f32 %v166, %v181
    %v187 = vmul.f32 %v166, %v185
    %v188 = vadd.f32 %v162, %v186
    %v189 = vadd.f32 %v163, %v187
    %190 = vset.pattern.permute.xlu0 2
    %191 = vperm.xlu0 %190, %v52
    %v192 = vpop.permute.xlu0 %191
    %v194 = vlaneseq
    %v195 = vshrl.u32 %v194, 7
    %v196 = vsub.s32 2, %v195
    %v197 = vrot.slane %v138, %v196
    %v198 = vlaneseq
    %v199 = vshrl.u32 %v198, 7
    %v200 = vsub.s32 6, %v199
    %v201 = vrot.slane %v138, %v200
    %v204 = vlaneseq
    %v205 = vshrl.u32 %v204, 7
    %v206 = vsub.s32 2, %v205
    %v207 = vrot.slane %v197, %v206
    %v208 = vlaneseq
    %v209 = vshrl.u32 %v208, 7
    %v210 = vsub.s32 2, %v209
    %v211 = vrot.slane %v201, %v210
    %v212 = vmul.f32 %v192, %v207
    %v213 = vmul.f32 %v192, %v211
    %v214 = vadd.f32 %v188, %v212
    %v215 = vadd.f32 %v189, %v213
    %216 = vset.pattern.permute.xlu0 3
    %217 = vperm.xlu0 %216, %v52
    %v218 = vpop.permute.xlu0 %217
    %v220 = vlaneseq
    %v221 = vshrl.u32 %v220, 7
    %v222 = vsub.s32 3, %v221
    %v223 = vrot.slane %v138, %v222
    %v224 = vlaneseq
    %v225 = vshrl.u32 %v224, 7
    %v226 = vsub.s32 7, %v225
    %v227 = vrot.slane %v138, %v226
    %v230 = vlaneseq
    %v231 = vshrl.u32 %v230, 7
    %v232 = vsub.s32 3, %v231
    %v233 = vrot.slane %v223, %v232
    %v234 = vlaneseq
    %v235 = vshrl.u32 %v234, 7
    %v236 = vsub.s32 3, %v235
    %v237 = vrot.slane %v227, %v236
    %v238 = vmul.f32 %v218, %v233
    %v239 = vmul.f32 %v218, %v237
    %v240 = vadd.f32 %v214, %v238
    %v241 = vadd.f32 %v215, %v239
    %242 = vset.pattern.permute.xlu0 4
    %243 = vperm.xlu0 %242, %v52
    %v244 = vpop.permute.xlu0 %243
    %v246 = vadd.f32 %v240, %v244
    %v247 = vadd.f32 %v241, %v244
    %249 = vrot.lane.b32.xlu0 %v247, 1
    %v250 = vpop.permute.xlu0 %249
    %253 = vrot.lane.b32.xlu0 %v246, 1
    %v254 = vpop.permute.xlu0 %253
    %vm255 = vcmask 7168
    %v256 = vsel %vm255, %v254, %v250
    %v259 = vsel %vm255, %v250, %v254
    %v261 = vlaneseq
    %v262 = vshrl.u32 %v261, 7
    %v263 = vsub.s32 0, %v262
    %v264 = vrot.slane %v53, %v263
    %v265 = vlaneseq
    %v266 = vshrl.u32 %v265, 7
    %v267 = vsub.s32 4, %v266
    %v268 = vrot.slane %v53, %v267
    %v271 = vlaneseq
    %v272 = vshrl.u32 %v271, 7
    %v273 = vsub.s32 0, %v272
    %v274 = vrot.slane %v264, %v273
    %v275 = vlaneseq
    %v276 = vshrl.u32 %v275, 7
    %v277 = vsub.s32 0, %v276
    %v278 = vrot.slane %v268, %v277
    %v279 = vmul.f32 %v259, %v274
    %v280 = vmul.f32 %v256, %v278
    %281 = vrot.lane.b32.xlu0 %v246, 127
    %v282 = vpop.permute.xlu0 %281
    %283 = vrot.lane.b32.xlu0 %v247, 127
    %v284 = vpop.permute.xlu0 %283
    %vm285 = vcmask 1039360
    %v286 = vsel %vm285, %v282, %v284
    %v290 = vsel %vm285, %v284, %v282
    %v291 = vlaneseq
    %v292 = vshrl.u32 %v291, 7
    %v293 = vsub.s32 1, %v292
    %v294 = vrot.slane %v53, %v293
    %v295 = vlaneseq
    %v296 = vshrl.u32 %v295, 7
    %v297 = vsub.s32 5, %v296
    %v298 = vrot.slane %v53, %v297
    %v301 = vlaneseq
    %v302 = vshrl.u32 %v301, 7
    %v303 = vsub.s32 1, %v302
    %v304 = vrot.slane %v294, %v303
    %v305 = vlaneseq
    %v306 = vshrl.u32 %v305, 7
    %v307 = vsub.s32 1, %v306
    %v308 = vrot.slane %v298, %v307
    %v309 = vmul.f32 %v286, %v304
    %v310 = vmul.f32 %v290, %v308
    %312 = vrot.lane.b32.xlu0 %v280, 16
    %v313 = vpop.permute.xlu0 %312
    %316 = vrot.lane.b32.xlu0 %v279, 16
    %v317 = vpop.permute.xlu0 %316
    %vm318 = vcmask 130048
    %v319 = vsel %vm318, %v317, %v313
    %v322 = vsel %vm318, %v313, %v317
    %323 = vset.pattern.permute.xlu0 5
    %324 = vperm.xlu0 %323, %v52
    %v325 = vpop.permute.xlu0 %324
    %v327 = vmul.f32 %v325, %v322
    %v328 = vmul.f32 %v325, %v319
    %329 = vrot.lane.b32.xlu0 %v247, 16
    %v330 = vpop.permute.xlu0 %329
    %332 = vrot.lane.b32.xlu0 %v246, 16
    %v333 = vpop.permute.xlu0 %332
    %v334 = vsel %vm318, %v333, %v330
    %v337 = vsel %vm318, %v330, %v333
    %338 = vset.pattern.permute.xlu0 6
    %339 = vperm.xlu0 %338, %v52
    %v340 = vpop.permute.xlu0 %339
    %v342 = vmul.f32 %v340, %v337
    %v343 = vmul.f32 %v340, %v334
    %v344 = vadd.f32 %v327, %v342
    %v345 = vadd.f32 %v328, %v343
    %347 = vrot.lane.b32.xlu0 %v310, 16
    %v348 = vpop.permute.xlu0 %347
    %351 = vrot.lane.b32.xlu0 %v309, 16
    %v352 = vpop.permute.xlu0 %351
    %v353 = vsel %vm318, %v352, %v348
    %v356 = vsel %vm318, %v348, %v352
    %357 = vset.pattern.permute.xlu0 7
    %358 = vperm.xlu0 %357, %v52
    %v359 = vpop.permute.xlu0 %358
    %v361 = vmul.f32 %v359, %v356
    %v362 = vmul.f32 %v359, %v353
    %v363 = vadd.f32 %v344, %v361
    %v364 = vadd.f32 %v345, %v362
    %v365 = vlaneseq
    %v366 = vshrl.u32 %v365, 7
    %v367 = vsub.s32 2, %v366
    %v368 = vrot.slane %v53, %v367
    %v369 = vlaneseq
    %v370 = vshrl.u32 %v369, 7
    %v371 = vsub.s32 6, %v370
    %v372 = vrot.slane %v53, %v371
    %v375 = vlaneseq
    %v376 = vshrl.u32 %v375, 7
    %v377 = vsub.s32 2, %v376
    %v378 = vrot.slane %v368, %v377
    %v379 = vlaneseq
    %v380 = vshrl.u32 %v379, 7
    %v381 = vsub.s32 2, %v380
    %v382 = vrot.slane %v372, %v381
    %v383 = vmul.f32 %v363, %v378
    %v384 = vmul.f32 %v364, %v382
    %385 = vset.pattern.permute.xlu0 8
    %386 = vperm.xlu0 %385, %v52
    %v387 = vpop.permute.xlu0 %386
    %v389 = vmul.f32 %v387, %v279
    %v390 = vmul.f32 %v387, %v280
    %391 = vset.pattern.permute.xlu0 9
    %392 = vperm.xlu0 %391, %v52
    %v393 = vpop.permute.xlu0 %392
    %v395 = vmul.f32 %v393, %v246
    %v396 = vmul.f32 %v393, %v247
    %v397 = vadd.f32 %v389, %v395
    %v398 = vadd.f32 %v390, %v396
    %399 = vset.pattern.permute.xlu0 10
    %400 = vperm.xlu0 %399, %v52
    %v401 = vpop.permute.xlu0 %400
    %v403 = vmul.f32 %v401, %v309
    %v404 = vmul.f32 %v401, %v310
    %v405 = vadd.f32 %v397, %v403
    %v406 = vadd.f32 %v398, %v404
    %v407 = vadd.f32 %v383, %v405
    %v408 = vadd.f32 %v384, %v406
    %409 = vrot.lane.b32.xlu0 %v279, 112
    %v410 = vpop.permute.xlu0 %409
    %411 = vrot.lane.b32.xlu0 %v280, 112
    %v412 = vpop.permute.xlu0 %411
    %vm413 = vcmask 916480
    %v414 = vsel %vm413, %v410, %v412
    %v418 = vsel %vm413, %v412, %v410
    %419 = vset.pattern.permute.xlu0 11
    %420 = vperm.xlu0 %419, %v52
    %v421 = vpop.permute.xlu0 %420
    %v423 = vmul.f32 %v421, %v414
    %v424 = vmul.f32 %v421, %v418
    %425 = vrot.lane.b32.xlu0 %v246, 112
    %v426 = vpop.permute.xlu0 %425
    %427 = vrot.lane.b32.xlu0 %v247, 112
    %v428 = vpop.permute.xlu0 %427
    %v429 = vsel %vm413, %v426, %v428
    %v433 = vsel %vm413, %v428, %v426
    %434 = vset.pattern.permute.xlu0 12
    %435 = vperm.xlu0 %434, %v52
    %v436 = vpop.permute.xlu0 %435
    %v438 = vmul.f32 %v436, %v429
    %v439 = vmul.f32 %v436, %v433
    %v440 = vadd.f32 %v423, %v438
    %v441 = vadd.f32 %v424, %v439
    %442 = vrot.lane.b32.xlu0 %v309, 112
    %v443 = vpop.permute.xlu0 %442
    %444 = vrot.lane.b32.xlu0 %v310, 112
    %v445 = vpop.permute.xlu0 %444
    %v446 = vsel %vm413, %v443, %v445
    %v450 = vsel %vm413, %v445, %v443
    %451 = vset.pattern.permute.xlu0 13
    %452 = vperm.xlu0 %451, %v52
    %v453 = vpop.permute.xlu0 %452
    %v455 = vmul.f32 %v453, %v446
    %v456 = vmul.f32 %v453, %v450
    %v457 = vadd.f32 %v440, %v455
    %v458 = vadd.f32 %v441, %v456
    %v459 = vlaneseq
    %v460 = vshrl.u32 %v459, 7
    %v461 = vsub.s32 3, %v460
    %v462 = vrot.slane %v53, %v461
    %v463 = vlaneseq
    %v464 = vshrl.u32 %v463, 7
    %v465 = vsub.s32 7, %v464
    %v466 = vrot.slane %v53, %v465
    %v469 = vlaneseq
    %v470 = vshrl.u32 %v469, 7
    %v471 = vsub.s32 3, %v470
    %v472 = vrot.slane %v462, %v471
    %v473 = vlaneseq
    %v474 = vshrl.u32 %v473, 7
    %v475 = vsub.s32 3, %v474
    %v476 = vrot.slane %v466, %v475
    %v477 = vmul.f32 %v457, %v472
    %v478 = vmul.f32 %v458, %v476
    %v479 = vadd.f32 %v407, %v477
    %v480 = vadd.f32 %v408, %v478
    %481 = vset.pattern.permute.xlu0 14
    %482 = vperm.xlu0 %481, %v52
    %v483 = vpop.permute.xlu0 %482
    %v485 = vadd.f32 %v479, %v483
    %v486 = vadd.f32 %v480, %v483
    %v487 = vmax.f32 %v485, 0.0
    %v488 = vmax.f32 %v486, 0.0
    %489 = vset.pattern.permute.xlu0 15
    %490 = vperm.xlu0 %489, %v52
    %v491 = vpop.permute.xlu0 %490
    %v493 = vlaneseq
    %v494 = vshrl.u32 %v493, 7
    %v495 = vsub.s32 0, %v494
    %v496 = vrot.slane %v487, %v495
    %v497 = vlaneseq
    %v498 = vshrl.u32 %v497, 7
    %v499 = vsub.s32 0, %v498
    %v500 = vrot.slane %v488, %v499
    %v501 = vmul.f32 %v491, %v496
    %v502 = vmul.f32 %v491, %v500
    %503 = vset.pattern.permute.xlu0 16
    %504 = vperm.xlu0 %503, %v52
    %v505 = vpop.permute.xlu0 %504
    %v507 = vlaneseq
    %v508 = vshrl.u32 %v507, 7
    %v509 = vsub.s32 1, %v508
    %v510 = vrot.slane %v487, %v509
    %v511 = vlaneseq
    %v512 = vshrl.u32 %v511, 7
    %v513 = vsub.s32 1, %v512
    %v514 = vrot.slane %v488, %v513
    %v515 = vmul.f32 %v505, %v510
    %v516 = vmul.f32 %v505, %v514
    %v517 = vadd.f32 %v501, %v515
    %v518 = vadd.f32 %v502, %v516
    %519 = vset.pattern.permute.xlu0 17
    %520 = vperm.xlu0 %519, %v52
    %v521 = vpop.permute.xlu0 %520
    %v523 = vlaneseq
    %v524 = vshrl.u32 %v523, 7
    %v525 = vsub.s32 2, %v524
    %v526 = vrot.slane %v487, %v525
    %v527 = vlaneseq
    %v528 = vshrl.u32 %v527, 7
    %v529 = vsub.s32 2, %v528
    %v530 = vrot.slane %v488, %v529
    %v531 = vmul.f32 %v521, %v526
    %v532 = vmul.f32 %v521, %v530
    %v533 = vadd.f32 %v517, %v531
    %v534 = vadd.f32 %v518, %v532
    %535 = vset.pattern.permute.xlu0 18
    %536 = vperm.xlu0 %535, %v52
    %v537 = vpop.permute.xlu0 %536
    %v539 = vlaneseq
    %v540 = vshrl.u32 %v539, 7
    %v541 = vsub.s32 3, %v540
    %v542 = vrot.slane %v487, %v541
    %v543 = vlaneseq
    %v544 = vshrl.u32 %v543, 7
    %v545 = vsub.s32 3, %v544
    %v546 = vrot.slane %v488, %v545
    %v547 = vmul.f32 %v537, %v542
    %v548 = vmul.f32 %v537, %v546
    %v549 = vadd.f32 %v533, %v547
    %v550 = vadd.f32 %v534, %v548
    %551 = vset.pattern.permute.xlu0 19
    %552 = vperm.xlu0 %551, %v52
    %v553 = vpop.permute.xlu0 %552
    %v555 = vlaneseq
    %v556 = vshrl.u32 %v555, 7
    %v557 = vsub.s32 4, %v556
    %v558 = vrot.slane %v487, %v557
    %v559 = vlaneseq
    %v560 = vshrl.u32 %v559, 7
    %v561 = vsub.s32 4, %v560
    %v562 = vrot.slane %v488, %v561
    %v563 = vmul.f32 %v553, %v558
    %v564 = vmul.f32 %v553, %v562
    %v565 = vadd.f32 %v549, %v563
    %v566 = vadd.f32 %v550, %v564
    %567 = vset.pattern.permute.xlu0 20
    %568 = vperm.xlu0 %567, %v52
    %v569 = vpop.permute.xlu0 %568
    %v571 = vlaneseq
    %v572 = vshrl.u32 %v571, 7
    %v573 = vsub.s32 5, %v572
    %v574 = vrot.slane %v487, %v573
    %v575 = vlaneseq
    %v576 = vshrl.u32 %v575, 7
    %v577 = vsub.s32 5, %v576
    %v578 = vrot.slane %v488, %v577
    %v579 = vmul.f32 %v569, %v574
    %v580 = vmul.f32 %v569, %v578
    %v581 = vadd.f32 %v565, %v579
    %v582 = vadd.f32 %v566, %v580
    %583 = vset.pattern.permute.xlu0 21
    %584 = vperm.xlu0 %583, %v52
    %v585 = vpop.permute.xlu0 %584
    %v587 = vlaneseq
    %v588 = vshrl.u32 %v587, 7
    %v589 = vsub.s32 6, %v588
    %v590 = vrot.slane %v487, %v589
    %v591 = vlaneseq
    %v592 = vshrl.u32 %v591, 7
    %v593 = vsub.s32 6, %v592
    %v594 = vrot.slane %v488, %v593
    %v595 = vmul.f32 %v585, %v590
    %v596 = vmul.f32 %v585, %v594
    %v597 = vadd.f32 %v581, %v595
    %v598 = vadd.f32 %v582, %v596
    %599 = vset.pattern.permute.xlu0 22
    %600 = vperm.xlu0 %599, %v52
    %v601 = vpop.permute.xlu0 %600
    %v603 = vlaneseq
    %v604 = vshrl.u32 %v603, 7
    %v605 = vsub.s32 7, %v604
    %v606 = vrot.slane %v487, %v605
    %v607 = vlaneseq
    %v608 = vshrl.u32 %v607, 7
    %v609 = vsub.s32 7, %v608
    %v610 = vrot.slane %v488, %v609
    %v611 = vmul.f32 %v601, %v606
    %v612 = vmul.f32 %v601, %v610
    %v613 = vadd.f32 %v597, %v611
    %v614 = vadd.f32 %v598, %v612
    %615 = vset.pattern.permute.xlu0 25
    %616 = vperm.xlu0 %615, %v52
    %v617 = vpop.permute.xlu0 %616
    %v619 = vadd.f32 %v613, %v617
    %v620 = vadd.f32 %v614, %v617
    %v623 = vcombine.low %v619, %v620
    %625 = vst [vmem:[#allocation8] sm:$0xff] %v623
    %s626 = scalar_lea.vmem [#allocation2], 8
    %v627 = vld [vmem:[%s626] sm:$0xff]
    %v629 = vcombine.high %v627, %v627
    %v631 = vsel %vm58, %v627, 0.0
    %v632 = vrot.slane %v631, 4
    %v633 = vadd.f32 %v631, %v632
    %v634 = vrot.slane %v633, 2
    %v635 = vadd.f32 %v633, %v634
    %v636 = vrot.slane %v635, 1
    %v637 = vadd.f32 %v635, %v636
    %v638 = vsel %vm58, %v629, 0.0
    %v639 = vrot.slane %v638, 4
    %v640 = vadd.f32 %v638, %v639
    %v641 = vrot.slane %v640, 2
    %v642 = vadd.f32 %v640, %v641
    %v643 = vrot.slane %v642, 1
    %v644 = vadd.f32 %v642, %v643
    %v645 = vmul.f32 %v637, %v73
    %v646 = vmul.f32 %v644, %v73
    %v647 = vmul.f32 %v627, %v627
    %v649 = vcombine.high %v647, %v647
    %v651 = vsel %vm58, %v647, 0.0
    %v652 = vrot.slane %v651, 4
    %v653 = vadd.f32 %v651, %v652
    %v654 = vrot.slane %v653, 2
    %v655 = vadd.f32 %v653, %v654
    %v656 = vrot.slane %v655, 1
    %v657 = vadd.f32 %v655, %v656
    %v658 = vsel %vm58, %v649, 0.0
    %v659 = vrot.slane %v658, 4
    %v660 = vadd.f32 %v658, %v659
    %v661 = vrot.slane %v660, 2
    %v662 = vadd.f32 %v660, %v661
    %v663 = vrot.slane %v662, 1
    %v664 = vadd.f32 %v662, %v663
    %v665 = vmul.f32 %v657, %v73
    %v666 = vmul.f32 %v664, %v73
    %v667 = vmul.f32 %v645, %v645
    %v668 = vmul.f32 %v646, %v646
    %v669 = vsub.f32 %v665, %v667
    %v670 = vsub.f32 %v666, %v668
    %v671 = vadd.f32 %v669, 1e-06
    %v672 = vadd.f32 %v670, 1e-06
    %v673 = vrsqrt.pop %v671
    %v674 = vrsqrt.pop %v672
    %v677 = vcombine.low %v645, %v646
    %v679 = vsub.f32 %v627, %v677
    %v682 = vcombine.low %v673, %v674
    %v684 = vmul.f32 %v679, %v682
    %v685 = vmul.f32 %v684, %v124
    %v686 = vadd.f32 %v685, %v136
    %v688 = vlaneseq
    %v689 = vshrl.u32 %v688, 7
    %v690 = vsub.s32 0, %v689
    %v691 = vrot.slane %v686, %v690
    %v692 = vlaneseq
    %v693 = vshrl.u32 %v692, 7
    %v694 = vsub.s32 4, %v693
    %v695 = vrot.slane %v686, %v694
    %v698 = vlaneseq
    %v699 = vshrl.u32 %v698, 7
    %v700 = vsub.s32 0, %v699
    %v701 = vrot.slane %v691, %v700
    %v702 = vlaneseq
    %v703 = vshrl.u32 %v702, 7
    %v704 = vsub.s32 0, %v703
    %v705 = vrot.slane %v695, %v704
    %v706 = vmul.f32 %v141, %v701
    %v707 = vmul.f32 %v141, %v705
    %v708 = vlaneseq
    %v709 = vshrl.u32 %v708, 7
    %v710 = vsub.s32 1, %v709
    %v711 = vrot.slane %v686, %v710
    %v712 = vlaneseq
    %v713 = vshrl.u32 %v712, 7
    %v714 = vsub.s32 5, %v713
    %v715 = vrot.slane %v686, %v714
    %v718 = vlaneseq
    %v719 = vshrl.u32 %v718, 7
    %v720 = vsub.s32 1, %v719
    %v721 = vrot.slane %v711, %v720
    %v722 = vlaneseq
    %v723 = vshrl.u32 %v722, 7
    %v724 = vsub.s32 1, %v723
    %v725 = vrot.slane %v715, %v724
    %v726 = vmul.f32 %v166, %v721
    %v727 = vmul.f32 %v166, %v725
    %v728 = vadd.f32 %v706, %v726
    %v729 = vadd.f32 %v707, %v727
    %v730 = vlaneseq
    %v731 = vshrl.u32 %v730, 7
    %v732 = vsub.s32 2, %v731
    %v733 = vrot.slane %v686, %v732
    %v734 = vlaneseq
    %v735 = vshrl.u32 %v734, 7
    %v736 = vsub.s32 6, %v735
    %v737 = vrot.slane %v686, %v736
    %v740 = vlaneseq
    %v741 = vshrl.u32 %v740, 7
    %v742 = vsub.s32 2, %v741
    %v743 = vrot.slane %v733, %v742
    %v744 = vlaneseq
    %v745 = vshrl.u32 %v744, 7
    %v746 = vsub.s32 2, %v745
    %v747 = vrot.slane %v737, %v746
    %v748 = vmul.f32 %v192, %v743
    %v749 = vmul.f32 %v192, %v747
    %v750 = vadd.f32 %v728, %v748
    %v751 = vadd.f32 %v729, %v749
    %v752 = vlaneseq
    %v753 = vshrl.u32 %v752, 7
    %v754 = vsub.s32 3, %v753
    %v755 = vrot.slane %v686, %v754
    %v756 = vlaneseq
    %v757 = vshrl.u32 %v756, 7
    %v758 = vsub.s32 7, %v757
    %v759 = vrot.slane %v686, %v758
    %v762 = vlaneseq
    %v763 = vshrl.u32 %v762, 7
    %v764 = vsub.s32 3, %v763
    %v765 = vrot.slane %v755, %v764
    %v766 = vlaneseq
    %v767 = vshrl.u32 %v766, 7
    %v768 = vsub.s32 3, %v767
    %v769 = vrot.slane %v759, %v768
    %v770 = vmul.f32 %v218, %v765
    %v771 = vmul.f32 %v218, %v769
    %v772 = vadd.f32 %v750, %v770
    %v773 = vadd.f32 %v751, %v771
    %v774 = vadd.f32 %v772, %v244
    %v775 = vadd.f32 %v773, %v244
    %777 = vrot.lane.b32.xlu0 %v775, 1
    %v778 = vpop.permute.xlu0 %777
    %781 = vrot.lane.b32.xlu0 %v774, 1
    %v782 = vpop.permute.xlu0 %781
    %v783 = vsel %vm255, %v782, %v778
    %v786 = vsel %vm255, %v778, %v782
    %v787 = vmul.f32 %v786, %v274
    %v788 = vmul.f32 %v783, %v278
    %789 = vrot.lane.b32.xlu0 %v774, 127
    %v790 = vpop.permute.xlu0 %789
    %791 = vrot.lane.b32.xlu0 %v775, 127
    %v792 = vpop.permute.xlu0 %791
    %v793 = vsel %vm285, %v790, %v792
    %v797 = vsel %vm285, %v792, %v790
    %v798 = vmul.f32 %v793, %v304
    %v799 = vmul.f32 %v797, %v308
    %801 = vrot.lane.b32.xlu0 %v788, 16
    %v802 = vpop.permute.xlu0 %801
    %805 = vrot.lane.b32.xlu0 %v787, 16
    %v806 = vpop.permute.xlu0 %805
    %v807 = vsel %vm318, %v806, %v802
    %v810 = vsel %vm318, %v802, %v806
    %v811 = vmul.f32 %v325, %v810
    %v812 = vmul.f32 %v325, %v807
    %813 = vrot.lane.b32.xlu0 %v775, 16
    %v814 = vpop.permute.xlu0 %813
    %816 = vrot.lane.b32.xlu0 %v774, 16
    %v817 = vpop.permute.xlu0 %816
    %v818 = vsel %vm318, %v817, %v814
    %v821 = vsel %vm318, %v814, %v817
    %v822 = vmul.f32 %v340, %v821
    %v823 = vmul.f32 %v340, %v818
    %v824 = vadd.f32 %v811, %v822
    %v825 = vadd.f32 %v812, %v823
    %827 = vrot.lane.b32.xlu0 %v799, 16
    %v828 = vpop.permute.xlu0 %827
    %831 = vrot.lane.b32.xlu0 %v798, 16
    %v832 = vpop.permute.xlu0 %831
    %v833 = vsel %vm318, %v832, %v828
    %v836 = vsel %vm318, %v828, %v832
    %v837 = vmul.f32 %v359, %v836
    %v838 = vmul.f32 %v359, %v833
    %v839 = vadd.f32 %v824, %v837
    %v840 = vadd.f32 %v825, %v838
    %v841 = vmul.f32 %v839, %v378
    %v842 = vmul.f32 %v840, %v382
    %v843 = vmul.f32 %v387, %v787
    %v844 = vmul.f32 %v387, %v788
    %v845 = vmul.f32 %v393, %v774
    %v846 = vmul.f32 %v393, %v775
    %v847 = vadd.f32 %v843, %v845
    %v848 = vadd.f32 %v844, %v846
    %v849 = vmul.f32 %v401, %v798
    %v850 = vmul.f32 %v401, %v799
    %v851 = vadd.f32 %v847, %v849
    %v852 = vadd.f32 %v848, %v850
    %v853 = vadd.f32 %v841, %v851
    %v854 = vadd.f32 %v842, %v852
    %855 = vrot.lane.b32.xlu0 %v787, 112
    %v856 = vpop.permute.xlu0 %855
    %857 = vrot.lane.b32.xlu0 %v788, 112
    %v858 = vpop.permute.xlu0 %857
    %v859 = vsel %vm413, %v856, %v858
    %v863 = vsel %vm413, %v858, %v856
    %v864 = vmul.f32 %v421, %v859
    %v865 = vmul.f32 %v421, %v863
    %866 = vrot.lane.b32.xlu0 %v774, 112
    %v867 = vpop.permute.xlu0 %866
    %868 = vrot.lane.b32.xlu0 %v775, 112
    %v869 = vpop.permute.xlu0 %868
    %v870 = vsel %vm413, %v867, %v869
    %v874 = vsel %vm413, %v869, %v867
    %v875 = vmul.f32 %v436, %v870
    %v876 = vmul.f32 %v436, %v874
    %v877 = vadd.f32 %v864, %v875
    %v878 = vadd.f32 %v865, %v876
    %879 = vrot.lane.b32.xlu0 %v798, 112
    %v880 = vpop.permute.xlu0 %879
    %881 = vrot.lane.b32.xlu0 %v799, 112
    %v882 = vpop.permute.xlu0 %881
    %v883 = vsel %vm413, %v880, %v882
    %v887 = vsel %vm413, %v882, %v880
    %v888 = vmul.f32 %v453, %v883
    %v889 = vmul.f32 %v453, %v887
    %v890 = vadd.f32 %v877, %v888
    %v891 = vadd.f32 %v878, %v889
    %v892 = vmul.f32 %v890, %v472
    %v893 = vmul.f32 %v891, %v476
    %v894 = vadd.f32 %v853, %v892
    %v895 = vadd.f32 %v854, %v893
    %v896 = vadd.f32 %v894, %v483
    %v897 = vadd.f32 %v895, %v483
    %v898 = vmax.f32 %v896, 0.0
    %v899 = vmax.f32 %v897, 0.0
    %v900 = vlaneseq
    %v901 = vshrl.u32 %v900, 7
    %v902 = vsub.s32 0, %v901
    %v903 = vrot.slane %v898, %v902
    %v904 = vlaneseq
    %v905 = vshrl.u32 %v904, 7
    %v906 = vsub.s32 0, %v905
    %v907 = vrot.slane %v899, %v906
    %v908 = vmul.f32 %v491, %v903
    %v909 = vmul.f32 %v491, %v907
    %v910 = vlaneseq
    %v911 = vshrl.u32 %v910, 7
    %v912 = vsub.s32 1, %v911
    %v913 = vrot.slane %v898, %v912
    %v914 = vlaneseq
    %v915 = vshrl.u32 %v914, 7
    %v916 = vsub.s32 1, %v915
    %v917 = vrot.slane %v899, %v916
    %v918 = vmul.f32 %v505, %v913
    %v919 = vmul.f32 %v505, %v917
    %v920 = vadd.f32 %v908, %v918
    %v921 = vadd.f32 %v909, %v919
    %v922 = vlaneseq
    %v923 = vshrl.u32 %v922, 7
    %v924 = vsub.s32 2, %v923
    %v925 = vrot.slane %v898, %v924
    %v926 = vlaneseq
    %v927 = vshrl.u32 %v926, 7
    %v928 = vsub.s32 2, %v927
    %v929 = vrot.slane %v899, %v928
    %v930 = vmul.f32 %v521, %v925
    %v931 = vmul.f32 %v521, %v929
    %v932 = vadd.f32 %v920, %v930
    %v933 = vadd.f32 %v921, %v931
    %v934 = vlaneseq
    %v935 = vshrl.u32 %v934, 7
    %v936 = vsub.s32 3, %v935
    %v937 = vrot.slane %v898, %v936
    %v938 = vlaneseq
    %v939 = vshrl.u32 %v938, 7
    %v940 = vsub.s32 3, %v939
    %v941 = vrot.slane %v899, %v940
    %v942 = vmul.f32 %v537, %v937
    %v943 = vmul.f32 %v537, %v941
    %v944 = vadd.f32 %v932, %v942
    %v945 = vadd.f32 %v933, %v943
    %v946 = vlaneseq
    %v947 = vshrl.u32 %v946, 7
    %v948 = vsub.s32 4, %v947
    %v949 = vrot.slane %v898, %v948
    %v950 = vlaneseq
    %v951 = vshrl.u32 %v950, 7
    %v952 = vsub.s32 4, %v951
    %v953 = vrot.slane %v899, %v952
    %v954 = vmul.f32 %v553, %v949
    %v955 = vmul.f32 %v553, %v953
    %v956 = vadd.f32 %v944, %v954
    %v957 = vadd.f32 %v945, %v955
    %v958 = vlaneseq
    %v959 = vshrl.u32 %v958, 7
    %v960 = vsub.s32 5, %v959
    %v961 = vrot.slane %v898, %v960
    %v962 = vlaneseq
    %v963 = vshrl.u32 %v962, 7
    %v964 = vsub.s32 5, %v963
    %v965 = vrot.slane %v899, %v964
    %v966 = vmul.f32 %v569, %v961
    %v967 = vmul.f32 %v569, %v965
    %v968 = vadd.f32 %v956, %v966
    %v969 = vadd.f32 %v957, %v967
    %v970 = vlaneseq
    %v971 = vshrl.u32 %v970, 7
    %v972 = vsub.s32 6, %v971
    %v973 = vrot.slane %v898, %v972
    %v974 = vlaneseq
    %v975 = vshrl.u32 %v974, 7
    %v976 = vsub.s32 6, %v975
    %v977 = vrot.slane %v899, %v976
    %v978 = vmul.f32 %v585, %v973
    %v979 = vmul.f32 %v585, %v977
    %v980 = vadd.f32 %v968, %v978
    %v981 = vadd.f32 %v969, %v979
    %v982 = vlaneseq
    %v983 = vshrl.u32 %v982, 7
    %v984 = vsub.s32 7, %v983
    %v985 = vrot.slane %v898, %v984
    %v986 = vlaneseq
    %v987 = vshrl.u32 %v986, 7
    %v988 = vsub.s32 7, %v987
    %v989 = vrot.slane %v899, %v988
    %v990 = vmul.f32 %v601, %v985
    %v991 = vmul.f32 %v601, %v989
    %v992 = vadd.f32 %v980, %v990
    %v993 = vadd.f32 %v981, %v991
    %v994 = vadd.f32 %v992, %v617
    %v995 = vadd.f32 %v993, %v617
    %v998 = vcombine.low %v994, %v995
    %s1000 = scalar_lea.vmem [#allocation8], 8
    %1001 = vst [vmem:[%s1000] sm:$0xff] %v998
    // Predicated region
    $region26: #{tpu_custom_call.1} parent=1 // pred_check
      _
    $region27: #{tpu_custom_call.1} parent=1 // pred_check_branch
      %1003 = sbr.rel (0) target = $region29
    $region28: #{tpu_custom_call.1} parent=1 // pred_region
      %s1005 = ssub.s32 256, 256
      %1006 = vsyncadd [#allocation4], %s1005
      %s1007 = sshll.u32 [#allocation8], 4
      %s1008 = int_to_ptr.vmem [resolvable:$true] %s1007
      %1013 = dma.vmem_to_hbm [thread:$0]  %s1008, 256, %s3, [#allocation4], 128, 128, 8
    $region29: #{tpu_custom_call.1} parent=1 // pred_fallthru
      _
    // Predicated region
    $region30: #{tpu_custom_call.1} parent=1 // pred_check
      _
    $region31: #{tpu_custom_call.1} parent=1 // pred_check_branch
      %1015 = sbr.rel (0) target = $region33
    $region32: #{tpu_custom_call.1} parent=1 // pred_region
      %1016 = dma.done [#allocation4], 256
    $region33: #{tpu_custom_call.1} parent=1 // pred_fallthru
      _
    %1017 = vsyncpa [#allocation3], 1
    %1018 = vsyncpa [#allocation6], 1
    %1019 = vsyncpa [#allocation4], 1

</llo_original>
